<compile_context>
chip_gen: v7x
topology: tpu7x:2x2x1
jax: 0.10.0
libtpu: 0.0.40
codegen_flags: <defaults>
</compile_context>

<pallas_src>
from functools import partial

import jax
import jax.numpy as jnp
from jax.experimental import pallas as pl
from jax.experimental.pallas import tpu as pltpu


# ---------------------------------------------------------------------------
# helpers
# ---------------------------------------------------------------------------
def _round_up(x, m):
    return (x + m - 1) // m * m


# ---------------------------------------------------------------------------
# fused kernel
# ---------------------------------------------------------------------------
def _encoder_fused_kernel(x_ref, w1_ref, b1_ref, g1_ref, be1_ref,
                          w2_ref, b2_ref, g2_ref, be2_ref, w3_ref, b3_ref,
                          out_ref,
                          h1_scr, h2_scr, s1_scr, s2_scr, f1_scr, f2_scr,
                          *, tb, batch, num_layers, hidden_size, eps):
    """grid = (phase, batch_tile).

    phase 0: h1 = relu(x @ w1 + b1)          -> VMEM, accumulate bn1 stats
    phase 1: h2 = relu(bn1(h1) @ w2 + b2)    -> VMEM, accumulate bn2 stats
    phase 2: out[l] = (bn2(h2) @ w3 + b3)[:, l*H:(l+1)*H]   (permute fused)
    """
    phase = pl.program_id(0)
    i = pl.program_id(1)
    inv_n = 1.0 / batch

    # Row-validity mask (folds batch padding out of the statistics). Built as
    # a (1, tb) ones-row so the reduction runs as a matmul on the idle MXU.
    col = jax.lax.broadcasted_iota(jnp.int32, (1, tb), 1)
    ones = ((i * tb + col) < batch).astype(jnp.float32)

    def accum_stats(s_ref, h):
        part = jnp.concatenate(
            [jnp.dot(ones, h, preferred_element_type=jnp.float32),
             jnp.dot(ones, h * h, preferred_element_type=jnp.float32)],
            axis=0)

        @pl.when(i == 0)
        def _():
            s_ref[...] = jnp.zeros_like(s_ref)

        s_ref[...] += part

    def fold_bn(s_ref, g_ref, be_ref, f_ref):
        # Fold batch-norm (batch stats) into per-feature scale/shift, once per
        # phase (hoisted out of the per-tile body).
        mean = s_ref[0:1, :] * inv_n
        var = jnp.maximum(s_ref[1:2, :] * inv_n - mean * mean, 0.0)
        scale = jax.lax.rsqrt(var + eps) * g_ref[...]
        f_ref[0:1, :] = scale
        f_ref[1:2, :] = be_ref[...] - mean * scale

    # ---- phase 0: fc1 + relu, accumulate bn1 stats -------------------------
    @pl.when(phase == 0)
    def _():
        h = jnp.dot(x_ref[...], w1_ref[...],
                    preferred_element_type=jnp.float32) + b1_ref[...]
        h = jnp.maximum(h, 0.0)
        h1_scr[i] = h.astype(h1_scr.dtype)
        accum_stats(s1_scr, h)

    # ---- phase 1: bn1 + fc2 + relu, accumulate bn2 stats --------------------
    @pl.when(phase == 1)
    def _():
        @pl.when(i == 0)
        def _():
            fold_bn(s1_scr, g1_ref, be1_ref, f1_scr)

        h = h1_scr[i].astype(jnp.float32) * f1_scr[0:1, :] + f1_scr[1:2, :]
        # dropout1: identity (eval mode)
        h = jnp.dot(h.astype(jnp.bfloat16), w2_ref[...],
                    preferred_element_type=jnp.float32) + b2_ref[...]
        h = jnp.maximum(h, 0.0)
        h2_scr[i] = h.astype(h2_scr.dtype)
        accum_stats(s2_scr, h)

    # ---- phase 2: bn2 + fc3, emit [L, tb, H] directly -----------------------
    @pl.when(phase == 2)
    def _():
        @pl.when(i == 0)
        def _():
            fold_bn(s2_scr, g2_ref, be2_ref, f2_scr)

        h = h2_scr[i].astype(jnp.float32) * f2_scr[0:1, :] + f2_scr[1:2, :]
        # dropout2: identity (eval mode)
        o = jnp.dot(h.astype(jnp.bfloat16), w3_ref[...],
                    preferred_element_type=jnp.float32) + b3_ref[...]
        for layer in range(num_layers):  # static unroll: permute(1,0,2) fused
            out_ref[layer] = o[:, layer * hidden_size:(layer + 1) * hidden_size
                               ].astype(out_ref.dtype)


# ---------------------------------------------------------------------------
# parameter preparation & forward wrapper
# ---------------------------------------------------------------------------
def prepare_params(params):
    """Cast weights to bf16; pad only hidden feature dims (h1, h2) to 128.

    The contraction dim of w1 (input_size) and the output dim of w3 (L*H) are
    left unpadded — the first cuts the HBM read of x, the second feeds the
    fused [L, B, H] stores.
    """
    (w1, b1, g1, be1, w2, b2, g2, be2, w3, b3) = params
    inp, h1 = w1.shape
    h2 = w2.shape[1]
    lh = w3.shape[1]
    h1_p = _round_up(h1, 128)
    h2_p = _round_up(h2, 128)

    def padw(w, r, c):
        return jnp.pad(w, ((0, r - w.shape[0]), (0, c - w.shape[1]))
                       ).astype(jnp.bfloat16)

    def padv(v, c):
        return jnp.pad(v.astype(jnp.float32), (0, c - v.shape[0])).reshape(1, c)

    return dict(
        w1=padw(w1, inp, h1_p), b1=padv(b1, h1_p),
        g1=padv(g1, h1_p), be1=padv(be1, h1_p),
        w2=padw(w2, h1_p, h2_p), b2=padv(b2, h2_p),
        g2=padv(g2, h2_p), be2=padv(be2, h2_p),
        w3=padw(w3, h2_p, lh), b3=padv(b3, lh),
        dims=(inp, h1, h2, lh),
    )


def encoder_forward(x, prepped, num_layers, hidden_size):
    """x: [B, input_size] -> [num_layers, B, hidden_size]."""
    b, inp = x.shape
    _, h1, h2, lh = prepped["dims"]
    assert lh == num_layers * hidden_size
    h1_p = prepped["w1"].shape[1]
    h2_p = prepped["w2"].shape[1]

    # Batch tile: large (good DMA/compute overlap), multiple of 16 (bf16
    # sublane tile for the resident activation scratch).
    tb = min(2048, _round_up(b, 16))
    nb = pl.cdiv(b, tb)
    b_pad = nb * tb

    # Resident-activation VMEM budget check (h1 + h2 scratch, bf16).
    act_bytes = b_pad * (h1_p + h2_p) * 2
    assert act_bytes <= 40 * 1024 * 1024, (
        "batch too large for VMEM-resident activations; "
        "TODO(synk): fall back to a 3-pass HBM-staged pipeline")

    # Pad batch rows with zeros and cast to bf16 (halves the x read; removes
    # the former 4x feature-dim pad entirely).
    x_p = jnp.pad(x, ((0, b_pad - b), (0, 0))).astype(jnp.bfloat16)

    def res(shape):  # resident blocks (weights / bn params): constant index
        return pl.BlockSpec(shape, lambda p, i: (0, 0))

    # x is only consumed in phase 0; pin its block index afterwards so it is
    # not re-fetched during phases 1-2.
    x_spec = pl.BlockSpec((tb, inp),
                          lambda p, i: (jnp.where(p == 0, i, nb - 1), 0))
    # Output blocks only advance (and hence only write back) during phase 2.
    out_spec = pl.BlockSpec((num_layers, tb, hidden_size),
                            lambda p, i: (0, jnp.where(p == 2, i, 0), 0))

    out = pl.pallas_call(
        partial(_encoder_fused_kernel, tb=tb, batch=b, num_layers=num_layers,
                hidden_size=hidden_size, eps=1e-5),
        grid=(3, nb),
        in_specs=[
            x_spec,
            res((inp, h1_p)), res((1, h1_p)), res((1, h1_p)), res((1, h1_p)),
            res((h1_p, h2_p)), res((1, h2_p)), res((1, h2_p)), res((1, h2_p)),
            res((h2_p, lh)), res((1, lh)),
        ],
        out_specs=out_spec,
        out_shape=jax.ShapeDtypeStruct((num_layers, b_pad, hidden_size),
                                       jnp.float32),
        scratch_shapes=[
            pltpu.VMEM((nb, tb, h1_p), jnp.bfloat16),   # h1 (resident acts)
            pltpu.VMEM((nb, tb, h2_p), jnp.bfloat16),   # h2 (resident acts)
            pltpu.VMEM((2, h1_p), jnp.float32),          # bn1 [sum; sum_sq]
            pltpu.VMEM((2, h2_p), jnp.float32),          # bn2 [sum; sum_sq]
            pltpu.VMEM((2, h1_p), jnp.float32),          # bn1 [scale; shift]
            pltpu.VMEM((2, h2_p), jnp.float32),          # bn2 [scale; shift]
        ],
        compiler_params=pltpu.CompilerParams(
            # Stats/activations are shared scratch across phases -> both axes
            # sequential. TODO(synk): v7x dual-TC split w/ per-core partial stats.
            dimension_semantics=("arbitrary", "arbitrary"),
            vmem_limit_bytes=48 * 1024 * 1024,  # < v7x 64 MiB physical VMEM
        ),
    )(x_p, prepped["w1"], prepped["b1"], prepped["g1"], prepped["be1"],
      prepped["w2"], prepped["b2"], prepped["g2"], prepped["be2"],
      prepped["w3"], prepped["b3"])

    return out if b_pad == b else out[:, :b, :]


# ---------------------------------------------------------------------------
# reference & test harness
# ---------------------------------------------------------------------------
def init_params(key, input_size, hidden_size, num_layers):
    """Deterministic synthetic parameters; Linear weights stored as [in, out]."""
    H1 = hidden_size * num_layers * 2
    H2 = hidden_size * num_layers
    ks = jax.random.split(key, 6)

    def lin(k, fan_in, fan_out):
        bound = 1.0 / jnp.sqrt(fan_in)
        kw, kb = jax.random.split(k)
        w = jax.random.uniform(kw, (fan_in, fan_out), jnp.float32, -bound, bound)
        b = jax.random.uniform(kb, (fan_out,), jnp.float32, -bound, bound)
        return w, b

    w1, b1 = lin(ks[0], input_size, H1)
    w2, b2 = lin(ks[1], H1, H2)
    w3, b3 = lin(ks[2], H2, H2)
    g1 = 1.0 + 0.01 * jax.random.normal(ks[3], (H1,), jnp.float32)
    be1 = 0.01 * jax.random.normal(ks[4], (H1,), jnp.float32)
    g2 = 1.0 + 0.01 * jax.random.normal(ks[5], (H2,), jnp.float32)
    be2 = jnp.zeros((H2,), jnp.float32)
    return (w1, b1, g1, be1, w2, b2, g2, be2, w3, b3)


def encoder_ref(x, params, num_layers, hidden_size, mimic_bf16=True):
    """Pure-JAX reference. mimic_bf16=True mirrors the kernel's bf16 MXU inputs."""
    eps = 1e-5
    (w1, b1, g1, be1, w2, b2, g2, be2, w3, b3) = params
    mdt = jnp.bfloat16 if mimic_bf16 else jnp.float32

    def mm(a, w, b):
        return jnp.dot(a.astype(mdt), w.astype(mdt),
                       preferred_element_type=jnp.float32) + b

    def bn_scale_shift(h, g, be):
        n = h.shape[0]
        mean = jnp.sum(h, 0) / n
        var = jnp.maximum(jnp.sum(h * h, 0) / n - mean * mean, 0.0)
        scale = jax.lax.rsqrt(var + eps) * g
        return scale, be - mean * scale

    h = jnp.maximum(mm(x, w1, b1), 0.0)
    sc, sh = bn_scale_shift(h, g1, be1)
    h = h.astype(mdt).astype(jnp.float32) * sc + sh
    h = jnp.maximum(mm(h, w2, b2), 0.0)
    sc, sh = bn_scale_shift(h, g2, be2)
    h = h.astype(mdt).astype(jnp.float32) * sc + sh
    out = mm(h, w3, b3)
    return out.reshape(x.shape[0], num_layers, hidden_size).transpose(1, 0, 2)


if __name__ == "__main__":
    input_size = 32
    hidden_size = 16
    num_layers = 2
    batch = 8

    key = jax.random.PRNGKey(0)
    kx, kp = jax.random.split(key)
    x = jax.random.normal(kx, (batch, input_size), jnp.float32)
    params = init_params(kp, input_size, hidden_size, num_layers)
    prepped = prepare_params(params)

    fwd = jax.jit(lambda xx: encoder_forward(xx, prepped, num_layers, hidden_size))
    out = jax.block_until_ready(fwd(x))

    assert out.shape == (num_layers, batch, hidden_size), out.shape

    # Tight check vs a reference that mirrors the kernel's bf16-matmul numerics.
    ref_bf16 = encoder_ref(x, params, num_layers, hidden_size, mimic_bf16=True)
    assert jnp.allclose(out, ref_bf16, atol=2e-3, rtol=2e-3), "mismatch vs bf16 reference"

    # Loose sanity check vs pure-f32 math (bf16 MXU inputs cost ~1e-2 relative).
    ref_f32 = encoder_ref(x, params, num_layers, hidden_size, mimic_bf16=False)
    assert jnp.allclose(out, ref_f32, atol=1e-1, rtol=1e-1), "gross mismatch vs f32 reference"

    print("KERNEL_OK")
</pallas_src>

<mosaic_0001>
module attributes {stable_mosaic.version = 11 : i64} {
  func.func @_encoder_fused_kernel(%arg0: i32, %arg1: i32, %arg2: memref<16x32xbf16, #tpu.memory_space<vmem>>, %arg3: memref<32x128xbf16, #tpu.memory_space<vmem>>, %arg4: memref<1x128xf32, #tpu.memory_space<vmem>>, %arg5: memref<1x128xf32, #tpu.memory_space<vmem>>, %arg6: memref<1x128xf32, #tpu.memory_space<vmem>>, %arg7: memref<128x128xbf16, #tpu.memory_space<vmem>>, %arg8: memref<1x128xf32, #tpu.memory_space<vmem>>, %arg9: memref<1x128xf32, #tpu.memory_space<vmem>>, %arg10: memref<1x128xf32, #tpu.memory_space<vmem>>, %arg11: memref<128x32xbf16, #tpu.memory_space<vmem>>, %arg12: memref<1x32xf32, #tpu.memory_space<vmem>>, %arg13: memref<2x16x16xf32, #tpu.memory_space<vmem>>, %arg14: memref<1x16x128xbf16, #tpu.memory_space<vmem>>, %arg15: memref<1x16x128xbf16, #tpu.memory_space<vmem>>, %arg16: memref<2x128xf32, #tpu.memory_space<vmem>>, %arg17: memref<2x128xf32, #tpu.memory_space<vmem>>, %arg18: memref<2x128xf32, #tpu.memory_space<vmem>>, %arg19: memref<2x128xf32, #tpu.memory_space<vmem>>) attributes {dimension_semantics = [#tpu.dimension_semantics<arbitrary>, #tpu.dimension_semantics<arbitrary>], iteration_bounds = array<i64: 3, 1>, scalar_prefetch = 0 : i64, scratch_operands = 6 : i64, tpu.core_type = #tpu.core_type<tc>, window_params = [{transform_indices = @transform_0, window_bounds = array<i64: 16, 32>}, {pipeline_mode = #tpu.pipeline_mode<synchronous>, transform_indices = @transform_1, window_bounds = array<i64: 32, 128>}, {pipeline_mode = #tpu.pipeline_mode<synchronous>, transform_indices = @transform_2, window_bounds = array<i64: 1, 128>}, {pipeline_mode = #tpu.pipeline_mode<synchronous>, transform_indices = @transform_3, window_bounds = array<i64: 1, 128>}, {pipeline_mode = #tpu.pipeline_mode<synchronous>, transform_indices = @transform_4, window_bounds = array<i64: 1, 128>}, {pipeline_mode = #tpu.pipeline_mode<synchronous>, transform_indices = @transform_5, window_bounds = array<i64: 128, 128>}, {pipeline_mode = #tpu.pipeline_mode<synchronous>, transform_indices = @transform_6, window_bounds = array<i64: 1, 128>}, {pipeline_mode = #tpu.pipeline_mode<synchronous>, transform_indices = @transform_7, window_bounds = array<i64: 1, 128>}, {pipeline_mode = #tpu.pipeline_mode<synchronous>, transform_indices = @transform_8, window_bounds = array<i64: 1, 128>}, {pipeline_mode = #tpu.pipeline_mode<synchronous>, transform_indices = @transform_9, window_bounds = array<i64: 128, 32>}, {pipeline_mode = #tpu.pipeline_mode<synchronous>, transform_indices = @transform_10, window_bounds = array<i64: 1, 32>}, {transform_indices = @transform_11, window_bounds = array<i64: 2, 16, 16>}]} {
    %0 = tpu.iota {dimensions = array<i32: 1>} : vector<1x16xi32>
    %c16_i32 = arith.constant 16 : i32
    %1 = arith.muli %arg1, %c16_i32 : i32
    %2 = vector.broadcast %1 : i32 to vector<1x16xi32>
    %3 = arith.addi %2, %0 : vector<1x16xi32>
    %c8_i32 = arith.constant 8 : i32
    %4 = vector.broadcast %c8_i32 : i32 to vector<1x16xi32>
    %5 = arith.cmpi slt, %3, %4 : vector<1x16xi32>
    %6 = arith.extui %5 : vector<1x16xi1> to vector<1x16xi32>
    %7 = arith.sitofp %6 : vector<1x16xi32> to vector<1x16xf32>
    %c0_i32 = arith.constant 0 : i32
    %8 = arith.cmpi eq, %arg0, %c0_i32 : i32
    %9 = arith.extui %8 : i1 to i32
    %c0_i32_0 = arith.constant 0 : i32
    %10 = arith.cmpi ne, %9, %c0_i32_0 : i32
    scf.if %10 {
      %c0 = arith.constant 0 : index
      %c0_3 = arith.constant 0 : index
      %17 = vector.load %arg2[%c0, %c0_3] : memref<16x32xbf16, #tpu.memory_space<vmem>>, vector<16x32xbf16>
      %c0_4 = arith.constant 0 : index
      %c0_5 = arith.constant 0 : index
      %18 = vector.load %arg3[%c0_4, %c0_5] : memref<32x128xbf16, #tpu.memory_space<vmem>>, vector<32x128xbf16>
      %cst = arith.constant dense<0.000000e+00> : vector<16x128xf32>
      %19 = tpu.matmul %17, %18, %cst {dimension_numbers = #tpu.dot_dimension_numbers<[1], [0], [0], [1], [0, 0, 1, 1], [], []>} : vector<16x32xbf16>, vector<32x128xbf16>, vector<16x128xf32> -> vector<16x128xf32>
      %c0_6 = arith.constant 0 : index
      %c0_7 = arith.constant 0 : index
      %20 = vector.load %arg4[%c0_6, %c0_7] : memref<1x128xf32, #tpu.memory_space<vmem>>, vector<1x128xf32>
      %21 = vector.broadcast %20 : vector<1x128xf32> to vector<16x128xf32>
      %22 = arith.addf %19, %21 : vector<16x128xf32>
      %cst_8 = arith.constant 0.000000e+00 : f32
      %23 = vector.broadcast %cst_8 : f32 to vector<16x128xf32>
      %24 = arith.maximumf %22, %23 : vector<16x128xf32>
      %25 = arith.truncf %24 : vector<16x128xf32> to vector<16x128xbf16>
      %26 = arith.index_cast %arg1 : i32 to index
      %c0_9 = arith.constant 0 : index
      %c0_10 = arith.constant 0 : index
      %27 = vector.load %arg14[%26, %c0_9, %c0_10] : memref<1x16x128xbf16, #tpu.memory_space<vmem>>, vector<1x16x128xbf16>
      %28 = vector.shape_cast %27 : vector<1x16x128xbf16> to vector<16x128xbf16>
      %29 = vector.shape_cast %25 : vector<16x128xbf16> to vector<1x16x128xbf16>
      tpu.vector_store %arg14[%26, %c0_9, %c0_10], %29 {strides = array<i32>} : memref<1x16x128xbf16, #tpu.memory_space<vmem>>, vector<1x16x128xbf16>,
      %cst_11 = arith.constant dense<0.000000e+00> : vector<1x128xf32>
      %30 = tpu.matmul %7, %24, %cst_11 {dimension_numbers = #tpu.dot_dimension_numbers<[1], [0], [0], [1], [0, 0, 1, 1], [], []>} : vector<1x16xf32>, vector<16x128xf32>, vector<1x128xf32> -> vector<1x128xf32>
      %31 = arith.mulf %24, %24 : vector<16x128xf32>
      %cst_12 = arith.constant dense<0.000000e+00> : vector<1x128xf32>
      %32 = tpu.matmul %7, %31, %cst_12 {dimension_numbers = #tpu.dot_dimension_numbers<[1], [0], [0], [1], [0, 0, 1, 1], [], []>} : vector<1x16xf32>, vector<16x128xf32>, vector<1x128xf32> -> vector<1x128xf32>
      %33 = tpu.concatenate %30, %32 in 0 : vector<1x128xf32>, vector<1x128xf32> -> vector<2x128xf32>
      %c0_i32_13 = arith.constant 0 : i32
      %34 = arith.cmpi eq, %arg1, %c0_i32_13 : i32
      %35 = arith.extui %34 : i1 to i32
      %c0_i32_14 = arith.constant 0 : i32
      %36 = arith.cmpi ne, %35, %c0_i32_14 : i32
      scf.if %36 {
        %cst_19 = arith.constant 0.000000e+00 : f32
        %40 = vector.broadcast %cst_19 : f32 to vector<2x128xf32>
        %c0_20 = arith.constant 0 : index
        %c0_21 = arith.constant 0 : index
        %41 = vector.load %arg16[%c0_20, %c0_21] : memref<2x128xf32, #tpu.memory_space<vmem>>, vector<2x128xf32>
        tpu.vector_store %arg16[%c0_20, %c0_21], %40 {strides = array<i32>} : memref<2x128xf32, #tpu.memory_space<vmem>>, vector<2x128xf32>,
      } else {
      }
      %c0_15 = arith.constant 0 : index
      %c0_16 = arith.constant 0 : index
      %37 = vector.load %arg16[%c0_15, %c0_16] : memref<2x128xf32, #tpu.memory_space<vmem>>, vector<2x128xf32>
      %38 = arith.addf %37, %33 : vector<2x128xf32>
      %c0_17 = arith.constant 0 : index
      %c0_18 = arith.constant 0 : index
      %39 = vector.load %arg16[%c0_17, %c0_18] : memref<2x128xf32, #tpu.memory_space<vmem>>, vector<2x128xf32>
      tpu.vector_store %arg16[%c0_17, %c0_18], %38 {strides = array<i32>} : memref<2x128xf32, #tpu.memory_space<vmem>>, vector<2x128xf32>,
    } else {
    }
    %c1_i32 = arith.constant 1 : i32
    %11 = arith.cmpi eq, %arg0, %c1_i32 : i32
    %12 = arith.extui %11 : i1 to i32
    %c0_i32_1 = arith.constant 0 : i32
    %13 = arith.cmpi ne, %12, %c0_i32_1 : i32
    scf.if %13 {
      %c0_i32_3 = arith.constant 0 : i32
      %17 = arith.cmpi eq, %arg1, %c0_i32_3 : i32
      %18 = arith.extui %17 : i1 to i32
      %c0_i32_4 = arith.constant 0 : i32
      %19 = arith.cmpi ne, %18, %c0_i32_4 : i32
      scf.if %19 {
        %c0_24 = arith.constant 0 : index
        %c0_25 = arith.constant 0 : index
        %53 = vector.load %arg16[%c0_24, %c0_25] : memref<2x128xf32, #tpu.memory_space<vmem>>, vector<1x128xf32>
        %cst_26 = arith.constant 1.250000e-01 : f32
        %54 = vector.broadcast %cst_26 : f32 to vector<1x128xf32>
        %55 = arith.mulf %53, %54 : vector<1x128xf32>
        %c1_27 = arith.constant 1 : index
        %c0_28 = arith.constant 0 : index
        %56 = vector.load %arg16[%c1_27, %c0_28] : memref<2x128xf32, #tpu.memory_space<vmem>>, vector<1x128xf32>
        %cst_29 = arith.constant 1.250000e-01 : f32
        %57 = vector.broadcast %cst_29 : f32 to vector<1x128xf32>
        %58 = arith.mulf %56, %57 : vector<1x128xf32>
        %59 = arith.mulf %55, %55 : vector<1x128xf32>
        %60 = arith.subf %58, %59 : vector<1x128xf32>
        %cst_30 = arith.constant 0.000000e+00 : f32
        %61 = vector.broadcast %cst_30 : f32 to vector<1x128xf32>
        %62 = arith.maximumf %60, %61 : vector<1x128xf32>
        %cst_31 = arith.constant 9.99999974E-6 : f32
        %63 = vector.broadcast %cst_31 : f32 to vector<1x128xf32>
        %64 = arith.addf %62, %63 : vector<1x128xf32>
        %65 = math.rsqrt %64 : vector<1x128xf32>
        %c0_32 = arith.constant 0 : index
        %c0_33 = arith.constant 0 : index
        %66 = vector.load %arg5[%c0_32, %c0_33] : memref<1x128xf32, #tpu.memory_space<vmem>>, vector<1x128xf32>
        %67 = arith.mulf %65, %66 : vector<1x128xf32>
        %c0_34 = arith.constant 0 : index
        %c0_35 = arith.constant 0 : index
        %68 = vector.load %arg18[%c0_34, %c0_35] : memref<2x128xf32, #tpu.memory_space<vmem>>, vector<1x128xf32>
        tpu.vector_store %arg18[%c0_34, %c0_35], %67 {strides = array<i32>} : memref<2x128xf32, #tpu.memory_space<vmem>>, vector<1x128xf32>,
        %c0_36 = arith.constant 0 : index
        %c0_37 = arith.constant 0 : index
        %69 = vector.load %arg6[%c0_36, %c0_37] : memref<1x128xf32, #tpu.memory_space<vmem>>, vector<1x128xf32>
        %70 = arith.mulf %55, %67 : vector<1x128xf32>
        %71 = arith.subf %69, %70 : vector<1x128xf32>
        %c1_38 = arith.constant 1 : index
        %c0_39 = arith.constant 0 : index
        %72 = vector.load %arg18[%c1_38, %c0_39] : memref<2x128xf32, #tpu.memory_space<vmem>>, vector<1x128xf32>
        tpu.vector_store %arg18[%c1_38, %c0_39], %71 {strides = array<i32>} : memref<2x128xf32, #tpu.memory_space<vmem>>, vector<1x128xf32>,
      } else {
      }
      %20 = arith.index_cast %arg1 : i32 to index
      %c0 = arith.constant 0 : index
      %c0_5 = arith.constant 0 : index
      %21 = vector.load %arg14[%20, %c0, %c0_5] : memref<1x16x128xbf16, #tpu.memory_space<vmem>>, vector<1x16x128xbf16>
      %22 = vector.shape_cast %21 : vector<1x16x128xbf16> to vector<16x128xbf16>
      %23 = arith.extf %22 : vector<16x128xbf16> to vector<16x128xf32>
      %c0_6 = arith.constant 0 : index
      %c0_7 = arith.constant 0 : index
      %24 = vector.load %arg18[%c0_6, %c0_7] : memref<2x128xf32, #tpu.memory_space<vmem>>, vector<1x128xf32>
      %25 = vector.broadcast %24 : vector<1x128xf32> to vector<16x128xf32>
      %26 = arith.mulf %23, %25 : vector<16x128xf32>
      %c1 = arith.constant 1 : index
      %c0_8 = arith.constant 0 : index
      %27 = vector.load %arg18[%c1, %c0_8] : memref<2x128xf32, #tpu.memory_space<vmem>>, vector<1x128xf32>
      %28 = vector.broadcast %27 : vector<1x128xf32> to vector<16x128xf32>
      %29 = arith.addf %26, %28 : vector<16x128xf32>
      %30 = arith.truncf %29 : vector<16x128xf32> to vector<16x128xbf16>
      %c0_9 = arith.constant 0 : index
      %c0_10 = arith.constant 0 : index
      %31 = vector.load %arg7[%c0_9, %c0_10] : memref<128x128xbf16, #tpu.memory_space<vmem>>, vector<128x128xbf16>
      %cst = arith.constant dense<0.000000e+00> : vector<16x128xf32>
      %32 = tpu.matmul %30, %31, %cst {dimension_numbers = #tpu.dot_dimension_numbers<[1], [0], [0], [1], [0, 0, 1, 1], [], []>} : vector<16x128xbf16>, vector<128x128xbf16>, vector<16x128xf32> -> vector<16x128xf32>
      %c0_11 = arith.constant 0 : index
      %c0_12 = arith.constant 0 : index
      %33 = vector.load %arg8[%c0_11, %c0_12] : memref<1x128xf32, #tpu.memory_space<vmem>>, vector<1x128xf32>
      %34 = vector.broadcast %33 : vector<1x128xf32> to vector<16x128xf32>
      %35 = arith.addf %32, %34 : vector<16x128xf32>
      %cst_13 = arith.constant 0.000000e+00 : f32
      %36 = vector.broadcast %cst_13 : f32 to vector<16x128xf32>
      %37 = arith.maximumf %35, %36 : vector<16x128xf32>
      %38 = arith.truncf %37 : vector<16x128xf32> to vector<16x128xbf16>
      %39 = arith.index_cast %arg1 : i32 to index
      %c0_14 = arith.constant 0 : index
      %c0_15 = arith.constant 0 : index
      %40 = vector.load %arg15[%39, %c0_14, %c0_15] : memref<1x16x128xbf16, #tpu.memory_space<vmem>>, vector<1x16x128xbf16>
      %41 = vector.shape_cast %40 : vector<1x16x128xbf16> to vector<16x128xbf16>
      %42 = vector.shape_cast %38 : vector<16x128xbf16> to vector<1x16x128xbf16>
      tpu.vector_store %arg15[%39, %c0_14, %c0_15], %42 {strides = array<i32>} : memref<1x16x128xbf16, #tpu.memory_space<vmem>>, vector<1x16x128xbf16>,
      %cst_16 = arith.constant dense<0.000000e+00> : vector<1x128xf32>
      %43 = tpu.matmul %7, %37, %cst_16 {dimension_numbers = #tpu.dot_dimension_numbers<[1], [0], [0], [1], [0, 0, 1, 1], [], []>} : vector<1x16xf32>, vector<16x128xf32>, vector<1x128xf32> -> vector<1x128xf32>
      %44 = arith.mulf %37, %37 : vector<16x128xf32>
      %cst_17 = arith.constant dense<0.000000e+00> : vector<1x128xf32>
      %45 = tpu.matmul %7, %44, %cst_17 {dimension_numbers = #tpu.dot_dimension_numbers<[1], [0], [0], [1], [0, 0, 1, 1], [], []>} : vector<1x16xf32>, vector<16x128xf32>, vector<1x128xf32> -> vector<1x128xf32>
      %46 = tpu.concatenate %43, %45 in 0 : vector<1x128xf32>, vector<1x128xf32> -> vector<2x128xf32>
      %c0_i32_18 = arith.constant 0 : i32
      %47 = arith.cmpi eq, %arg1, %c0_i32_18 : i32
      %48 = arith.extui %47 : i1 to i32
      %c0_i32_19 = arith.constant 0 : i32
      %49 = arith.cmpi ne, %48, %c0_i32_19 : i32
      scf.if %49 {
        %cst_24 = arith.constant 0.000000e+00 : f32
        %53 = vector.broadcast %cst_24 : f32 to vector<2x128xf32>
        %c0_25 = arith.constant 0 : index
        %c0_26 = arith.constant 0 : index
        %54 = vector.load %arg17[%c0_25, %c0_26] : memref<2x128xf32, #tpu.memory_space<vmem>>, vector<2x128xf32>
        tpu.vector_store %arg17[%c0_25, %c0_26], %53 {strides = array<i32>} : memref<2x128xf32, #tpu.memory_space<vmem>>, vector<2x128xf32>,
      } else {
      }
      %c0_20 = arith.constant 0 : index
      %c0_21 = arith.constant 0 : index
      %50 = vector.load %arg17[%c0_20, %c0_21] : memref<2x128xf32, #tpu.memory_space<vmem>>, vector<2x128xf32>
      %51 = arith.addf %50, %46 : vector<2x128xf32>
      %c0_22 = arith.constant 0 : index
      %c0_23 = arith.constant 0 : index
      %52 = vector.load %arg17[%c0_22, %c0_23] : memref<2x128xf32, #tpu.memory_space<vmem>>, vector<2x128xf32>
      tpu.vector_store %arg17[%c0_22, %c0_23], %51 {strides = array<i32>} : memref<2x128xf32, #tpu.memory_space<vmem>>, vector<2x128xf32>,
    } else {
    }
    %c2_i32 = arith.constant 2 : i32
    %14 = arith.cmpi eq, %arg0, %c2_i32 : i32
    %15 = arith.extui %14 : i1 to i32
    %c0_i32_2 = arith.constant 0 : i32
    %16 = arith.cmpi ne, %15, %c0_i32_2 : i32
    scf.if %16 {
      %c0_i32_3 = arith.constant 0 : i32
      %17 = arith.cmpi eq, %arg1, %c0_i32_3 : i32
      %18 = arith.extui %17 : i1 to i32
      %c0_i32_4 = arith.constant 0 : i32
      %19 = arith.cmpi ne, %18, %c0_i32_4 : i32
      scf.if %19 {
        %c0_19 = arith.constant 0 : index
        %c0_20 = arith.constant 0 : index
        %44 = vector.load %arg17[%c0_19, %c0_20] : memref<2x128xf32, #tpu.memory_space<vmem>>, vector<1x128xf32>
        %cst_21 = arith.constant 1.250000e-01 : f32
        %45 = vector.broadcast %cst_21 : f32 to vector<1x128xf32>
        %46 = arith.mulf %44, %45 : vector<1x128xf32>
        %c1_22 = arith.constant 1 : index
        %c0_23 = arith.constant 0 : index
        %47 = vector.load %arg17[%c1_22, %c0_23] : memref<2x128xf32, #tpu.memory_space<vmem>>, vector<1x128xf32>
        %cst_24 = arith.constant 1.250000e-01 : f32
        %48 = vector.broadcast %cst_24 : f32 to vector<1x128xf32>
        %49 = arith.mulf %47, %48 : vector<1x128xf32>
        %50 = arith.mulf %46, %46 : vector<1x128xf32>
        %51 = arith.subf %49, %50 : vector<1x128xf32>
        %cst_25 = arith.constant 0.000000e+00 : f32
        %52 = vector.broadcast %cst_25 : f32 to vector<1x128xf32>
        %53 = arith.maximumf %51, %52 : vector<1x128xf32>
        %cst_26 = arith.constant 9.99999974E-6 : f32
        %54 = vector.broadcast %cst_26 : f32 to vector<1x128xf32>
        %55 = arith.addf %53, %54 : vector<1x128xf32>
        %56 = math.rsqrt %55 : vector<1x128xf32>
        %c0_27 = arith.constant 0 : index
        %c0_28 = arith.constant 0 : index
        %57 = vector.load %arg9[%c0_27, %c0_28] : memref<1x128xf32, #tpu.memory_space<vmem>>, vector<1x128xf32>
        %58 = arith.mulf %56, %57 : vector<1x128xf32>
        %c0_29 = arith.constant 0 : index
        %c0_30 = arith.constant 0 : index
        %59 = vector.load %arg19[%c0_29, %c0_30] : memref<2x128xf32, #tpu.memory_space<vmem>>, vector<1x128xf32>
        tpu.vector_store %arg19[%c0_29, %c0_30], %58 {strides = array<i32>} : memref<2x128xf32, #tpu.memory_space<vmem>>, vector<1x128xf32>,
        %c0_31 = arith.constant 0 : index
        %c0_32 = arith.constant 0 : index
        %60 = vector.load %arg10[%c0_31, %c0_32] : memref<1x128xf32, #tpu.memory_space<vmem>>, vector<1x128xf32>
        %61 = arith.mulf %46, %58 : vector<1x128xf32>
        %62 = arith.subf %60, %61 : vector<1x128xf32>
        %c1_33 = arith.constant 1 : index
        %c0_34 = arith.constant 0 : index
        %63 = vector.load %arg19[%c1_33, %c0_34] : memref<2x128xf32, #tpu.memory_space<vmem>>, vector<1x128xf32>
        tpu.vector_store %arg19[%c1_33, %c0_34], %62 {strides = array<i32>} : memref<2x128xf32, #tpu.memory_space<vmem>>, vector<1x128xf32>,
      } else {
      }
      %20 = arith.index_cast %arg1 : i32 to index
      %c0 = arith.constant 0 : index
      %c0_5 = arith.constant 0 : index
      %21 = vector.load %arg15[%20, %c0, %c0_5] : memref<1x16x128xbf16, #tpu.memory_space<vmem>>, vector<1x16x128xbf16>
      %22 = vector.shape_cast %21 : vector<1x16x128xbf16> to vector<16x128xbf16>
      %23 = arith.extf %22 : vector<16x128xbf16> to vector<16x128xf32>
      %c0_6 = arith.constant 0 : index
      %c0_7 = arith.constant 0 : index
      %24 = vector.load %arg19[%c0_6, %c0_7] : memref<2x128xf32, #tpu.memory_space<vmem>>, vector<1x128xf32>
      %25 = vector.broadcast %24 : vector<1x128xf32> to vector<16x128xf32>
      %26 = arith.mulf %23, %25 : vector<16x128xf32>
      %c1 = arith.constant 1 : index
      %c0_8 = arith.constant 0 : index
      %27 = vector.load %arg19[%c1, %c0_8] : memref<2x128xf32, #tpu.memory_space<vmem>>, vector<1x128xf32>
      %28 = vector.broadcast %27 : vector<1x128xf32> to vector<16x128xf32>
      %29 = arith.addf %26, %28 : vector<16x128xf32>
      %30 = arith.truncf %29 : vector<16x128xf32> to vector<16x128xbf16>
      %c0_9 = arith.constant 0 : index
      %c0_10 = arith.constant 0 : index
      %31 = vector.load %arg11[%c0_9, %c0_10] : memref<128x32xbf16, #tpu.memory_space<vmem>>, vector<128x32xbf16>
      %cst = arith.constant dense<0.000000e+00> : vector<16x32xf32>
      %32 = tpu.matmul %30, %31, %cst {dimension_numbers = #tpu.dot_dimension_numbers<[1], [0], [0], [1], [0, 0, 1, 1], [], []>} : vector<16x128xbf16>, vector<128x32xbf16>, vector<16x32xf32> -> vector<16x32xf32>
      %c0_11 = arith.constant 0 : index
      %c0_12 = arith.constant 0 : index
      %33 = vector.load %arg12[%c0_11, %c0_12] : memref<1x32xf32, #tpu.memory_space<vmem>>, vector<1x32xf32>
      %34 = vector.broadcast %33 : vector<1x32xf32> to vector<16x32xf32>
      %35 = arith.addf %32, %34 : vector<16x32xf32>
      %36 = vector.extract_strided_slice %35 {offsets = [0, 0], sizes = [16, 16], strides = [1, 1]} : vector<16x32xf32> to vector<16x16xf32>
      %c0_13 = arith.constant 0 : index
      %c0_14 = arith.constant 0 : index
      %c0_15 = arith.constant 0 : index
      %37 = vector.load %arg13[%c0_13, %c0_14, %c0_15] : memref<2x16x16xf32, #tpu.memory_space<vmem>>, vector<1x16x16xf32>
      %38 = vector.shape_cast %37 : vector<1x16x16xf32> to vector<16x16xf32>
      %39 = vector.shape_cast %36 : vector<16x16xf32> to vector<1x16x16xf32>
      tpu.vector_store %arg13[%c0_13, %c0_14, %c0_15], %39 {strides = array<i32>} : memref<2x16x16xf32, #tpu.memory_space<vmem>>, vector<1x16x16xf32>,
      %40 = vector.extract_strided_slice %35 {offsets = [0, 16], sizes = [16, 16], strides = [1, 1]} : vector<16x32xf32> to vector<16x16xf32>
      %c1_16 = arith.constant 1 : index
      %c0_17 = arith.constant 0 : index
      %c0_18 = arith.constant 0 : index
      %41 = vector.load %arg13[%c1_16, %c0_17, %c0_18] : memref<2x16x16xf32, #tpu.memory_space<vmem>>, vector<1x16x16xf32>
      %42 = vector.shape_cast %41 : vector<1x16x16xf32> to vector<16x16xf32>
      %43 = vector.shape_cast %40 : vector<16x16xf32> to vector<1x16x16xf32>
      tpu.vector_store %arg13[%c1_16, %c0_17, %c0_18], %43 {strides = array<i32>} : memref<2x16x16xf32, #tpu.memory_space<vmem>>, vector<1x16x16xf32>,
    } else {
    }
    return
  }
  func.func @transform_0(%arg0: i32, %arg1: i32) -> (i32, i32) {
    %c0_i32 = arith.constant 0 : i32
    %0 = arith.cmpi eq, %arg0, %c0_i32 : i32
    %c0_i32_0 = arith.constant 0 : i32
    %1 = arith.select %0, %arg1, %c0_i32_0 : i32
    %c0_i32_1 = arith.constant 0 : i32
    %c0_i32_2 = arith.constant 0 : i32
    return %1, %c0_i32_1 : i32, i32
  }
  func.func @transform_1(%arg0: i32, %arg1: i32) -> (i32, i32) {
    %c0_i32 = arith.constant 0 : i32
    %c0_i32_0 = arith.constant 0 : i32
    %c0_i32_1 = arith.constant 0 : i32
    return %c0_i32, %c0_i32_0 : i32, i32
  }
  func.func @transform_2(%arg0: i32, %arg1: i32) -> (i32, i32) {
    %c0_i32 = arith.constant 0 : i32
    %c0_i32_0 = arith.constant 0 : i32
    %c0_i32_1 = arith.constant 0 : i32
    return %c0_i32, %c0_i32_0 : i32, i32
  }
  func.func @transform_3(%arg0: i32, %arg1: i32) -> (i32, i32) {
    %c0_i32 = arith.constant 0 : i32
    %c0_i32_0 = arith.constant 0 : i32
    %c0_i32_1 = arith.constant 0 : i32
    return %c0_i32, %c0_i32_0 : i32, i32
  }
  func.func @transform_4(%arg0: i32, %arg1: i32) -> (i32, i32) {
    %c0_i32 = arith.constant 0 : i32
    %c0_i32_0 = arith.constant 0 : i32
    %c0_i32_1 = arith.constant 0 : i32
    return %c0_i32, %c0_i32_0 : i32, i32
  }
  func.func @transform_5(%arg0: i32, %arg1: i32) -> (i32, i32) {
    %c0_i32 = arith.constant 0 : i32
    %c0_i32_0 = arith.constant 0 : i32
    %c0_i32_1 = arith.constant 0 : i32
    return %c0_i32, %c0_i32_0 : i32, i32
  }
  func.func @transform_6(%arg0: i32, %arg1: i32) -> (i32, i32) {
    %c0_i32 = arith.constant 0 : i32
    %c0_i32_0 = arith.constant 0 : i32
    %c0_i32_1 = arith.constant 0 : i32
    return %c0_i32, %c0_i32_0 : i32, i32
  }
  func.func @transform_7(%arg0: i32, %arg1: i32) -> (i32, i32) {
    %c0_i32 = arith.constant 0 : i32
    %c0_i32_0 = arith.constant 0 : i32
    %c0_i32_1 = arith.constant 0 : i32
    return %c0_i32, %c0_i32_0 : i32, i32
  }
  func.func @transform_8(%arg0: i32, %arg1: i32) -> (i32, i32) {
    %c0_i32 = arith.constant 0 : i32
    %c0_i32_0 = arith.constant 0 : i32
    %c0_i32_1 = arith.constant 0 : i32
    return %c0_i32, %c0_i32_0 : i32, i32
  }
  func.func @transform_9(%arg0: i32, %arg1: i32) -> (i32, i32) {
    %c0_i32 = arith.constant 0 : i32
    %c0_i32_0 = arith.constant 0 : i32
    %c0_i32_1 = arith.constant 0 : i32
    return %c0_i32, %c0_i32_0 : i32, i32
  }
  func.func @transform_10(%arg0: i32, %arg1: i32) -> (i32, i32) {
    %c0_i32 = arith.constant 0 : i32
    %c0_i32_0 = arith.constant 0 : i32
    %c0_i32_1 = arith.constant 0 : i32
    return %c0_i32, %c0_i32_0 : i32, i32
  }
  func.func @transform_11(%arg0: i32, %arg1: i32) -> (i32, i32, i32) {
    %c2_i32 = arith.constant 2 : i32
    %0 = arith.cmpi eq, %arg0, %c2_i32 : i32
    %c0_i32 = arith.constant 0 : i32
    %1 = arith.select %0, %arg1, %c0_i32 : i32
    %c0_i32_0 = arith.constant 0 : i32
    %c0_i32_1 = arith.constant 0 : i32
    %c0_i32_2 = arith.constant 0 : i32
    return %c0_i32_0, %1, %c0_i32_1 : i32, i32, i32
  }
}

</mosaic_0001>

<llo_original>
// kernel: _lambda_.1
$region0: #{_lambda_.1}
  #allocation0 [shape = 'u32[]', space=smem, size = 0x4, offset = 0x4, fixed_abs, tag = 'smem constant byte address 0x4 - core index']
  #allocation1 [shape = 'u32[144,128]{1,0:T(1,128)}', space=vmem, size = 0x12000, scoped, tag = 'internal scratch']
  #allocation2 [shape = 'bf16[1,16,128]{2,1,0:T(16,128)(2,1)}', space=vmem, size = 0x1000, scoped, tag = 'scratch operand']
  #allocation3 [shape = 'bf16[1,16,128]{2,1,0:T(16,128)(2,1)}', space=vmem, size = 0x1000, scoped, tag = 'scratch operand']
  #allocation4 [shape = 'f32[2,128]{1,0:T(2,128)}', space=vmem, size = 0x400, scoped, tag = 'scratch operand']
  #allocation5 [shape = 'f32[2,128]{1,0:T(2,128)}', space=vmem, size = 0x400, scoped, tag = 'scratch operand']
  #allocation6 [shape = 'f32[2,128]{1,0:T(2,128)}', space=vmem, size = 0x400, scoped, tag = 'scratch operand']
  #allocation7 [shape = 'f32[2,128]{1,0:T(2,128)}', space=vmem, size = 0x400, scoped, tag = 'scratch operand']
  %s0 = inlined_call_operand.vmem [shape: bf16[16,32], index: 0, kind: input, shape index: {}]
  %s1 = inlined_call_operand.vmem [shape: bf16[32,128], index: 1, kind: input, shape index: {}]
  %s2 = inlined_call_operand.hbm [shape: f32[1,128], index: 2, kind: input, shape index: {}]
  %s3 = inlined_call_operand.hbm [shape: f32[1,128], index: 3, kind: input, shape index: {}]
  %s4 = inlined_call_operand.hbm [shape: f32[1,128], index: 4, kind: input, shape index: {}]
  %s5 = inlined_call_operand.hbm [shape: bf16[128,128], index: 5, kind: input, shape index: {}]
  %s6 = inlined_call_operand.hbm [shape: f32[1,128], index: 6, kind: input, shape index: {}]
  %s7 = inlined_call_operand.hbm [shape: f32[1,128], index: 7, kind: input, shape index: {}]
  %s8 = inlined_call_operand.vmem [shape: f32[1,128], index: 8, kind: input, shape index: {}]
  %s9 = inlined_call_operand.vmem [shape: bf16[128,32], index: 9, kind: input, shape index: {}]
  %s10 = inlined_call_operand.vmem [shape: f32[1,32], index: 10, kind: input, shape index: {}]
  %s11 = inlined_call_operand.vmem [shape: f32[2,16,16], index: 11, kind: output, shape index: {}]
  %s12 = sld [smem:[#allocation0]]
  $region129: #{_lambda_.1} parent=0
    _
  %s14 = ssub.s32 1, %s12
  %s15 = scalar_select 0, %s14, %s12
  $region1: #{_lambda_.1} parent=0
    #allocation8 [shape = 'u8[512]{0}', space=vmem, size = 0x400, scoped, tag = 'input window, operand 2, single buffered']
    #allocation9 [shape = 's32[2]{0}', space=sflag, size = 0x8, scoped, tag = 'scoped memory for _lambda_.1']
    #allocation10 [shape = 'u8[512]{0}', space=vmem, size = 0x400, scoped, tag = 'input window, operand 3, single buffered']
    #allocation11 [shape = 's32[1]{0}', space=sflag, size = 0x4, scoped, tag = 'scoped memory for _lambda_.1']
    #allocation12 [shape = 'u8[512]{0}', space=vmem, size = 0x400, scoped, tag = 'input window, operand 4, single buffered']
    #allocation13 [shape = 'u8[32768]{0}', space=vmem, size = 0x8000, scoped, tag = 'input window, operand 5, single buffered']
    #allocation14 [shape = 's32[1]{0}', space=sflag, size = 0x4, scoped, tag = 'scoped memory for _lambda_.1']
    #allocation15 [shape = 'u8[512]{0}', space=vmem, size = 0x400, scoped, tag = 'input window, operand 6, single buffered']
    #allocation16 [shape = 'u8[512]{0}', space=vmem, size = 0x400, scoped, tag = 'input window, operand 7, single buffered']
    #allocation17 [shape = 's32[1]{0}', space=sflag, size = 0x4, scoped, tag = 'scoped memory for _lambda_.1']
    %16 = vsyncpa [#allocation9], 0
    %17 = vsyncpa [#allocation11], 0
    %18 = vsyncpa [#allocation14], 0
    %19 = vsyncpa [#allocation17], 0
    loop: start=0, step=1, limit=5
    $region2: #{_lambda_.1} parent=1 // loop_pre_header
      _
    $region3: #{_lambda_.1} parent=1 // loop_header
      %s21 = sphi 0, %s25
      %p22 = scmp.ge.s32.totalorder %s21, 5
      %s28 = sphi 0, %s40
      %s29 = sphi 0, %s36
      %s30 = sphi 0, %s28
      %s31 = sphi 0, %s29
      %s32 = sphi 0, %s30
      %s33 = sphi 0, %s31
      %s47 = sphi 0, %s49
      %s50 = sphi 0, %s47
      %s51 = sphi 0, %s50
      %s67 = sphi 0, %s51
      %s71 = sphi 0, %s71
      %s73 = sphi 0, %s71
      %s74 = sphi 0, %s73
      %s88 = sphi 0, %s74
      %s92 = sphi 0, %s92
      %s94 = sphi 0, %s92
      %s95 = sphi 0, %s94
      %s109 = sphi 0, %s95
      %s113 = sphi 0, %s113
      %s115 = sphi 0, %s113
      %s116 = sphi 0, %s115
      %s130 = sphi 0, %s116
      %s134 = sphi 0, %s134
      %s136 = sphi 0, %s134
      %s137 = sphi 0, %s136
      %s151 = sphi 0, %s137
      %s155 = sphi 0, %s155
      %s157 = sphi 0, %s155
      %s158 = sphi 0, %s157
      %s172 = sphi 0, %s158
      %s176 = sphi 0, %s176
      %s178 = sphi 0, %s176
      %s179 = sphi 0, %s178
      %s193 = sphi 0, %s179
      %s197 = sphi 0, %s197
      %s199 = sphi 0, %s197
      %s200 = sphi 0, %s199
      %s214 = sphi 0, %s200
      %s218 = sphi 0, %s218
      %s220 = sphi 0, %s218
      %s221 = sphi 0, %s220
      %s235 = sphi 0, %s221
      %s239 = sphi 0, %s239
      %s241 = sphi 0, %s239
      %s242 = sphi 0, %s241
      %s256 = sphi 0, %s242
      %s260 = sphi 0, %s260
      %s262 = sphi 0, %s260
      %s263 = sphi 0, %s262
      %s277 = sphi 0, %s263
      %s287 = sphi 0, %s289
      %s290 = sphi 0, %s287
      %s291 = sphi 0, %s290
      %s307 = sphi 0, %s291
    $region4: #{_lambda_.1} parent=1 // loop_header_branch
      %24 = sbr.rel (%p22) target = $region8
    $region5: #{_lambda_.1} parent=1 // loop_body
      %s26 = ssub.s32 %s21, 1
      %s27 = ssub.s32 %s21, 2
      %s34 = sadd.s32 1, %s29
      %p35 = scmp.ge.s32.totalorder %s34, 1
      %s36 = scalar_select %p35, 0, %s34
      %s37 = sadd.s32 1, %s28
      %s38 = scalar_select %p35, %s37, %s28
      %p39 = scmp.ge.s32.totalorder %s38, 3
      %s40 = scalar_select %p39, 0, %s38
      %p41 = scmp.eq.s32.totalorder %s28, 0
      %s42 = scalar_select %p41, %s29, 0
      %p43 = scmp.eq.s32.totalorder %s40, 0
      %s44 = scalar_select %p43, %s36, 0
      %s45 = ssub.s32 %s42, %s44
      %p46 = scmp.eq.s32.totalorder %s45, 0
      %s48 = sadd.s32 %s47, 1
      %s49 = scalar_select %p46, %s47, %s48
      %p52 = pneg %p46
      %p53 = scmp.eq.s32.totalorder %s21, 2
      %p54 = por %p52, %p53
      %p55 = scmp.ne.s32.totalorder %s47, %s50
      %p56 = scmp.eq.s32.totalorder %s21, 0
      %p57 = por %p55, %p56
      %p58 = scmp.ne.s32.totalorder %s47, %s50
      %p59 = scmp.eq.s32.totalorder %s26, 2
      %p60 = por %p58, %p59
      %p61 = scmp.ne.s32.totalorder %s50, %s51
      %p62 = scmp.eq.s32.totalorder %s26, 0
      %p63 = por %p61, %p62
      %p64 = scmp.ne.s32.totalorder %s50, %s51
      %p65 = scmp.eq.s32.totalorder %s27, 2
      %p66 = por %p64, %p65
      %p68 = scmp.ne.s32.totalorder %s51, %s67
      %p69 = scmp.eq.s32.totalorder %s27, 0
      %p70 = por %p68, %p69
      %s72 = sadd.s32 %s71, 1
      %p75 = scmp.eq.s32.totalorder %s21, 2
      %p76 = scmp.ne.s32.totalorder %s71, %s73
      %p77 = scmp.eq.s32.totalorder %s21, 0
      %p78 = por %p76, %p77
      %p79 = scmp.ne.s32.totalorder %s71, %s73
      %p80 = scmp.eq.s32.totalorder %s26, 2
      %p81 = por %p79, %p80
      %p82 = scmp.ne.s32.totalorder %s73, %s74
      %p83 = scmp.eq.s32.totalorder %s26, 0
      %p84 = por %p82, %p83
      %p85 = scmp.ne.s32.totalorder %s73, %s74
      %p86 = scmp.eq.s32.totalorder %s27, 2
      %p87 = por %p85, %p86
      %p89 = scmp.ne.s32.totalorder %s74, %s88
      %p90 = scmp.eq.s32.totalorder %s27, 0
      %p91 = por %p89, %p90
      %s93 = sadd.s32 %s92, 1
      %p96 = scmp.eq.s32.totalorder %s21, 2
      %p97 = scmp.ne.s32.totalorder %s92, %s94
      %p98 = scmp.eq.s32.totalorder %s21, 0
      %p99 = por %p97, %p98
      %p100 = scmp.ne.s32.totalorder %s92, %s94
      %p101 = scmp.eq.s32.totalorder %s26, 2
      %p102 = por %p100, %p101
      %p103 = scmp.ne.s32.totalorder %s94, %s95
      %p104 = scmp.eq.s32.totalorder %s26, 0
      %p105 = por %p103, %p104
      %p106 = scmp.ne.s32.totalorder %s94, %s95
      %p107 = scmp.eq.s32.totalorder %s27, 2
      %p108 = por %p106, %p107
      %p110 = scmp.ne.s32.totalorder %s95, %s109
      %p111 = scmp.eq.s32.totalorder %s27, 0
      %p112 = por %p110, %p111
      %s114 = sadd.s32 %s113, 1
      %p117 = scmp.eq.s32.totalorder %s21, 2
      %p118 = scmp.ne.s32.totalorder %s113, %s115
      %p119 = scmp.eq.s32.totalorder %s21, 0
      %p120 = por %p118, %p119
      %p121 = scmp.ne.s32.totalorder %s113, %s115
      %p122 = scmp.eq.s32.totalorder %s26, 2
      %p123 = por %p121, %p122
      %p124 = scmp.ne.s32.totalorder %s115, %s116
      %p125 = scmp.eq.s32.totalorder %s26, 0
      %p126 = por %p124, %p125
      %p127 = scmp.ne.s32.totalorder %s115, %s116
      %p128 = scmp.eq.s32.totalorder %s27, 2
      %p129 = por %p127, %p128
      %p131 = scmp.ne.s32.totalorder %s116, %s130
      %p132 = scmp.eq.s32.totalorder %s27, 0
      %p133 = por %p131, %p132
      %s135 = sadd.s32 %s134, 1
      %p138 = scmp.eq.s32.totalorder %s21, 2
      %p139 = scmp.ne.s32.totalorder %s134, %s136
      %p140 = scmp.eq.s32.totalorder %s21, 0
      %p141 = por %p139, %p140
      %p142 = scmp.ne.s32.totalorder %s134, %s136
      %p143 = scmp.eq.s32.totalorder %s26, 2
      %p144 = por %p142, %p143
      %p145 = scmp.ne.s32.totalorder %s136, %s137
      %p146 = scmp.eq.s32.totalorder %s26, 0
      %p147 = por %p145, %p146
      %p148 = scmp.ne.s32.totalorder %s136, %s137
      %p149 = scmp.eq.s32.totalorder %s27, 2
      %p150 = por %p148, %p149
      %p152 = scmp.ne.s32.totalorder %s137, %s151
      %p153 = scmp.eq.s32.totalorder %s27, 0
      %p154 = por %p152, %p153
      %s156 = sadd.s32 %s155, 1
      %p159 = scmp.eq.s32.totalorder %s21, 2
      %p160 = scmp.ne.s32.totalorder %s155, %s157
      %p161 = scmp.eq.s32.totalorder %s21, 0
      %p162 = por %p160, %p161
      %p163 = scmp.ne.s32.totalorder %s155, %s157
      %p164 = scmp.eq.s32.totalorder %s26, 2
      %p165 = por %p163, %p164
      %p166 = scmp.ne.s32.totalorder %s157, %s158
      %p167 = scmp.eq.s32.totalorder %s26, 0
      %p168 = por %p166, %p167
      %p169 = scmp.ne.s32.totalorder %s157, %s158
      %p170 = scmp.eq.s32.totalorder %s27, 2
      %p171 = por %p169, %p170
      %p173 = scmp.ne.s32.totalorder %s158, %s172
      %p174 = scmp.eq.s32.totalorder %s27, 0
      %p175 = por %p173, %p174
      %s177 = sadd.s32 %s176, 1
      %p180 = scmp.eq.s32.totalorder %s21, 2
      %p181 = scmp.ne.s32.totalorder %s176, %s178
      %p182 = scmp.eq.s32.totalorder %s21, 0
      %p183 = por %p181, %p182
      %p184 = scmp.ne.s32.totalorder %s176, %s178
      %p185 = scmp.eq.s32.totalorder %s26, 2
      %p186 = por %p184, %p185
      %p187 = scmp.ne.s32.totalorder %s178, %s179
      %p188 = scmp.eq.s32.totalorder %s26, 0
      %p189 = por %p187, %p188
      %p190 = scmp.ne.s32.totalorder %s178, %s179
      %p191 = scmp.eq.s32.totalorder %s27, 2
      %p192 = por %p190, %p191
      %p194 = scmp.ne.s32.totalorder %s179, %s193
      %p195 = scmp.eq.s32.totalorder %s27, 0
      %p196 = por %p194, %p195
      %s198 = sadd.s32 %s197, 1
      %p201 = scmp.eq.s32.totalorder %s21, 2
      %p202 = scmp.ne.s32.totalorder %s197, %s199
      %p203 = scmp.eq.s32.totalorder %s21, 0
      %p204 = por %p202, %p203
      %p205 = scmp.ne.s32.totalorder %s197, %s199
      %p206 = scmp.eq.s32.totalorder %s26, 2
      %p207 = por %p205, %p206
      %p208 = scmp.ne.s32.totalorder %s199, %s200
      %p209 = scmp.eq.s32.totalorder %s26, 0
      %p210 = por %p208, %p209
      %p211 = scmp.ne.s32.totalorder %s199, %s200
      %p212 = scmp.eq.s32.totalorder %s27, 2
      %p213 = por %p211, %p212
      %p215 = scmp.ne.s32.totalorder %s200, %s214
      %p216 = scmp.eq.s32.totalorder %s27, 0
      %p217 = por %p215, %p216
      %s219 = sadd.s32 %s218, 1
      %p222 = scmp.eq.s32.totalorder %s21, 2
      %p223 = scmp.ne.s32.totalorder %s218, %s220
      %p224 = scmp.eq.s32.totalorder %s21, 0
      %p225 = por %p223, %p224
      %p226 = scmp.ne.s32.totalorder %s218, %s220
      %p227 = scmp.eq.s32.totalorder %s26, 2
      %p228 = por %p226, %p227
      %p229 = scmp.ne.s32.totalorder %s220, %s221
      %p230 = scmp.eq.s32.totalorder %s26, 0
      %p231 = por %p229, %p230
      %p232 = scmp.ne.s32.totalorder %s220, %s221
      %p233 = scmp.eq.s32.totalorder %s27, 2
      %p234 = por %p232, %p233
      %p236 = scmp.ne.s32.totalorder %s221, %s235
      %p237 = scmp.eq.s32.totalorder %s27, 0
      %p238 = por %p236, %p237
      %s240 = sadd.s32 %s239, 1
      %p243 = scmp.eq.s32.totalorder %s21, 2
      %p244 = scmp.ne.s32.totalorder %s239, %s241
      %p245 = scmp.eq.s32.totalorder %s21, 0
      %p246 = por %p244, %p245
      %p247 = scmp.ne.s32.totalorder %s239, %s241
      %p248 = scmp.eq.s32.totalorder %s26, 2
      %p249 = por %p247, %p248
      %p250 = scmp.ne.s32.totalorder %s241, %s242
      %p251 = scmp.eq.s32.totalorder %s26, 0
      %p252 = por %p250, %p251
      %p253 = scmp.ne.s32.totalorder %s241, %s242
      %p254 = scmp.eq.s32.totalorder %s27, 2
      %p255 = por %p253, %p254
      %p257 = scmp.ne.s32.totalorder %s242, %s256
      %p258 = scmp.eq.s32.totalorder %s27, 0
      %p259 = por %p257, %p258
      %s261 = sadd.s32 %s260, 1
      %p264 = scmp.eq.s32.totalorder %s21, 2
      %p265 = scmp.ne.s32.totalorder %s260, %s262
      %p266 = scmp.eq.s32.totalorder %s21, 0
      %p267 = por %p265, %p266
      %p268 = scmp.ne.s32.totalorder %s260, %s262
      %p269 = scmp.eq.s32.totalorder %s26, 2
      %p270 = por %p268, %p269
      %p271 = scmp.ne.s32.totalorder %s262, %s263
      %p272 = scmp.eq.s32.totalorder %s26, 0
      %p273 = por %p271, %p272
      %p274 = scmp.ne.s32.totalorder %s262, %s263
      %p275 = scmp.eq.s32.totalorder %s27, 2
      %p276 = por %p274, %p275
      %p278 = scmp.ne.s32.totalorder %s263, %s277
      %p279 = scmp.eq.s32.totalorder %s27, 0
      %p280 = por %p278, %p279
      %p281 = scmp.eq.s32.totalorder %s28, 2
      %s282 = scalar_select %p281, %s29, 0
      %p283 = scmp.eq.s32.totalorder %s40, 2
      %s284 = scalar_select %p283, %s36, 0
      %s285 = ssub.s32 %s282, %s284
      %p286 = scmp.eq.s32.totalorder %s285, 0
      %s288 = sadd.s32 %s287, 1
      %s289 = scalar_select %p286, %s287, %s288
      %p292 = pneg %p286
      %p293 = scmp.eq.s32.totalorder %s21, 2
      %p294 = por %p292, %p293
      %p295 = scmp.ne.s32.totalorder %s287, %s290
      %p296 = scmp.eq.s32.totalorder %s21, 0
      %p297 = por %p295, %p296
      %p298 = scmp.ne.s32.totalorder %s287, %s290
      %p299 = scmp.eq.s32.totalorder %s26, 2
      %p300 = por %p298, %p299
      %p301 = scmp.ne.s32.totalorder %s290, %s291
      %p302 = scmp.eq.s32.totalorder %s26, 0
      %p303 = por %p301, %p302
      %p304 = scmp.ne.s32.totalorder %s290, %s291
      %p305 = scmp.eq.s32.totalorder %s27, 2
      %p306 = por %p304, %p305
      %p308 = scmp.ne.s32.totalorder %s291, %s307
      %p309 = scmp.eq.s32.totalorder %s27, 0
      %p310 = por %p308, %p309
      %p311 = scmp.le.s32.totalorder 1, %s21
      %p312 = scmp.lt.s32.totalorder %s21, 4
      %p313 = pnand %p311, %p312
      %p314 = pneg %p313
      // Predicated region
      $region9: #{_lambda_.1} parent=5 // pred_check
        _
      $region10: #{_lambda_.1} parent=5 // pred_check_branch
        %316 = sbr.rel (%p313) target = $region12
      $region11: #{_lambda_.1} parent=5 // pred_region
        %s317 = ssub.s32 %s21, 1
        // Predicated region
        $region13: #{_lambda_.1} parent=11 // pred_check
          %p318 = pneg %p84
        $region14: #{_lambda_.1} parent=11 // pred_check_branch
          %320 = sbr.rel (%p318) target = $region16
        $region15: #{_lambda_.1} parent=11 // pred_region
          _
        $region16: #{_lambda_.1} parent=11 // pred_fallthru
          _
        // Predicated region
        $region17: #{_lambda_.1} parent=11 // pred_check
          %p321 = pneg %p105
        $region18: #{_lambda_.1} parent=11 // pred_check_branch
          %323 = sbr.rel (%p321) target = $region20
        $region19: #{_lambda_.1} parent=11 // pred_region
          %s325 = ssub.s32 16, 16
          %326 = vsyncadd [#allocation9], %s325
          %s328 = sshll.u32 [#allocation8], 4
          %s329 = int_to_ptr.vmem [resolvable:$true] %s328
          %331 = dma.hbm_to_vmem [thread:$0]  %s2, 16, %s329, [#allocation9]
        $region20: #{_lambda_.1} parent=11 // pred_fallthru
          _
        // Predicated region
        $region21: #{_lambda_.1} parent=11 // pred_check
          %p332 = pneg %p126
        $region22: #{_lambda_.1} parent=11 // pred_check_branch
          %334 = sbr.rel (%p332) target = $region24
        $region23: #{_lambda_.1} parent=11 // pred_region
          %s336 = ssub.s32 16, 16
          %337 = vsyncadd [#allocation11], %s336
          %s339 = sshll.u32 [#allocation10], 4
          %s340 = int_to_ptr.vmem [resolvable:$true] %s339
          %342 = dma.hbm_to_vmem [thread:$0]  %s3, 16, %s340, [#allocation11]
        $region24: #{_lambda_.1} parent=11 // pred_fallthru
          _
        // Predicated region
        $region25: #{_lambda_.1} parent=11 // pred_check
          %p343 = pneg %p147
        $region26: #{_lambda_.1} parent=11 // pred_check_branch
          %345 = sbr.rel (%p343) target = $region28
        $region27: #{_lambda_.1} parent=11 // pred_region
          %s347 = ssub.s32 16, 16
          %348 = vsyncadd [#allocation11], %s347
          %s350 = sshll.u32 [#allocation12], 4
          %s351 = int_to_ptr.vmem [resolvable:$true] %s350
          %353 = dma.hbm_to_vmem [thread:$0]  %s4, 16, %s351, [#allocation11]
        $region28: #{_lambda_.1} parent=11 // pred_fallthru
          _
        // Predicated region
        $region29: #{_lambda_.1} parent=11 // pred_check
          %p354 = pneg %p168
        $region30: #{_lambda_.1} parent=11 // pred_check_branch
          %356 = sbr.rel (%p354) target = $region32
        $region31: #{_lambda_.1} parent=11 // pred_region
          %s358 = ssub.s32 1024, 1024
          %359 = vsyncadd [#allocation14], %s358
          %s360 = sshll.u32 [#allocation13], 4
          %s361 = int_to_ptr.vmem [resolvable:$true] %s360
          %366 = dma.hbm_to_vmem [thread:$0]  %s5, 1024, %s361, [#allocation14], 64, 64, 4
        $region32: #{_lambda_.1} parent=11 // pred_fallthru
          _
        // Predicated region
        $region33: #{_lambda_.1} parent=11 // pred_check
          %p367 = pneg %p189
        $region34: #{_lambda_.1} parent=11 // pred_check_branch
          %369 = sbr.rel (%p367) target = $region36
        $region35: #{_lambda_.1} parent=11 // pred_region
          %s371 = ssub.s32 16, 16
          %372 = vsyncadd [#allocation14], %s371
          %s374 = sshll.u32 [#allocation15], 4
          %s375 = int_to_ptr.vmem [resolvable:$true] %s374
          %377 = dma.hbm_to_vmem [thread:$0]  %s6, 16, %s375, [#allocation14]
        $region36: #{_lambda_.1} parent=11 // pred_fallthru
          _
        // Predicated region
        $region37: #{_lambda_.1} parent=11 // pred_check
          %p378 = pneg %p210
        $region38: #{_lambda_.1} parent=11 // pred_check_branch
          %380 = sbr.rel (%p378) target = $region40
        $region39: #{_lambda_.1} parent=11 // pred_region
          %s382 = ssub.s32 16, 16
          %383 = vsyncadd [#allocation17], %s382
          %s385 = sshll.u32 [#allocation16], 4
          %s386 = int_to_ptr.vmem [resolvable:$true] %s385
          %388 = dma.hbm_to_vmem [thread:$0]  %s7, 16, %s386, [#allocation17]
        $region40: #{_lambda_.1} parent=11 // pred_fallthru
          _
        // Predicated region
        $region41: #{_lambda_.1} parent=11 // pred_check
          %p389 = pneg %p231
        $region42: #{_lambda_.1} parent=11 // pred_check_branch
          %391 = sbr.rel (%p389) target = $region44
        $region43: #{_lambda_.1} parent=11 // pred_region
          _
        $region44: #{_lambda_.1} parent=11 // pred_fallthru
          _
        // Predicated region
        $region45: #{_lambda_.1} parent=11 // pred_check
          %p392 = pneg %p252
        $region46: #{_lambda_.1} parent=11 // pred_check_branch
          %394 = sbr.rel (%p392) target = $region48
        $region47: #{_lambda_.1} parent=11 // pred_region
          _
        $region48: #{_lambda_.1} parent=11 // pred_fallthru
          _
        // Predicated region
        $region49: #{_lambda_.1} parent=11 // pred_check
          %p395 = pneg %p273
        $region50: #{_lambda_.1} parent=11 // pred_check_branch
          %397 = sbr.rel (%p395) target = $region52
        $region51: #{_lambda_.1} parent=11 // pred_region
          _
        $region52: #{_lambda_.1} parent=11 // pred_fallthru
          _
      $region12: #{_lambda_.1} parent=5 // pred_fallthru
        _
      %p398 = scmp.lt.s32.totalorder %s21, 3
      // Predicated region
      $region53: #{_lambda_.1} parent=5 // pred_check
        %p399 = pneg %p398
      $region54: #{_lambda_.1} parent=5 // pred_check_branch
        %401 = sbr.rel (%p399) target = $region56
      $region55: #{_lambda_.1} parent=5 // pred_region
        // Predicated region
        $region57: #{_lambda_.1} parent=55 // pred_check
          %p402 = pneg %p57
        $region58: #{_lambda_.1} parent=55 // pred_check_branch
          %404 = sbr.rel (%p402) target = $region60
        $region59: #{_lambda_.1} parent=55 // pred_region
          %p405 = scmp.eq.s32.totalorder %s28, 0
          %s406 = scalar_select %p405, %s29, 0
          %s407 = smul.u32 2, %s406
          %p408 = scmp.lt.s32.totalorder %s407, 1
          %s409 = scalar_select %p408, %s407, 1
          %s410 = smul.addr %s409, 4
          %s411 = scalar_lea.vmem %s0, %s410
          %p412 = scmp.eq.s32.totalorder %s28, 0
          %s413 = scalar_select %p412, %s29, 0
          %s414 = smul.u32 2, %s413
        $region60: #{_lambda_.1} parent=55 // pred_fallthru
          _
      $region56: #{_lambda_.1} parent=5 // pred_fallthru
        _
      %p415 = scmp.le.s32.totalorder 1, %s21
      %p416 = scmp.lt.s32.totalorder %s21, 4
      %p417 = pnand %p415, %p416
      %p418 = pneg %p417
      // Predicated region
      $region61: #{_lambda_.1} parent=5 // pred_check
        _
      $region62: #{_lambda_.1} parent=5 // pred_check_branch
        %420 = sbr.rel (%p417) target = $region64
      $region63: #{_lambda_.1} parent=5 // pred_region
        %s421 = ssub.s32 %s21, 1
        // Predicated region
        $region65: #{_lambda_.1} parent=63 // pred_check
          %p422 = pneg %p105
        $region66: #{_lambda_.1} parent=63 // pred_check_branch
          %424 = sbr.rel (%p422) target = $region68
        $region67: #{_lambda_.1} parent=63 // pred_region
          %425 = dma.done [#allocation9], 16
        $region68: #{_lambda_.1} parent=63 // pred_fallthru
          _
        // Predicated region
        $region69: #{_lambda_.1} parent=63 // pred_check
          %p426 = pneg %p126
        $region70: #{_lambda_.1} parent=63 // pred_check_branch
          %428 = sbr.rel (%p426) target = $region72
        $region71: #{_lambda_.1} parent=63 // pred_region
          %429 = dma.done [#allocation11], 16
        $region72: #{_lambda_.1} parent=63 // pred_fallthru
          _
        // Predicated region
        $region73: #{_lambda_.1} parent=63 // pred_check
          %p430 = pneg %p147
        $region74: #{_lambda_.1} parent=63 // pred_check_branch
          %432 = sbr.rel (%p430) target = $region76
        $region75: #{_lambda_.1} parent=63 // pred_region
          %433 = dma.done [#allocation11], 16
        $region76: #{_lambda_.1} parent=63 // pred_fallthru
          _
        // Predicated region
        $region77: #{_lambda_.1} parent=63 // pred_check
          %p434 = pneg %p168
        $region78: #{_lambda_.1} parent=63 // pred_check_branch
          %436 = sbr.rel (%p434) target = $region80
        $region79: #{_lambda_.1} parent=63 // pred_region
          %437 = dma.done [#allocation14], 1024
        $region80: #{_lambda_.1} parent=63 // pred_fallthru
          _
        // Predicated region
        $region81: #{_lambda_.1} parent=63 // pred_check
          %p438 = pneg %p189
        $region82: #{_lambda_.1} parent=63 // pred_check_branch
          %440 = sbr.rel (%p438) target = $region84
        $region83: #{_lambda_.1} parent=63 // pred_region
          %441 = dma.done [#allocation14], 16
        $region84: #{_lambda_.1} parent=63 // pred_fallthru
          _
        // Predicated region
        $region85: #{_lambda_.1} parent=63 // pred_check
          %p442 = pneg %p210
        $region86: #{_lambda_.1} parent=63 // pred_check_branch
          %444 = sbr.rel (%p442) target = $region88
        $region87: #{_lambda_.1} parent=63 // pred_region
          %445 = dma.done [#allocation17], 16
        $region88: #{_lambda_.1} parent=63 // pred_fallthru
          _
        %p446 = scmp.eq.s32.totalorder %s30, 0
        %s447 = scalar_select %p446, %s31, 0
        %s448 = smul.u32 2, %s447
        %p449 = scmp.lt.s32.totalorder %s448, 1
        %s450 = scalar_select %p449, %s448, 1
        %s451 = smul.addr %s450, 4
        %s452 = scalar_lea.vmem %s0, %s451
        %p453 = pneg %p63
        %p454 = pneg %p60
        %p455 = pneg %p84
        %p456 = pneg %p81
        %p457 = pneg %p105
        %p458 = pneg %p102
        %p459 = pneg %p126
        %p460 = pneg %p123
        %p461 = pneg %p147
        %p462 = pneg %p144
        %p463 = pneg %p168
        %p464 = pneg %p165
        %p465 = pneg %p189
        %p466 = pneg %p186
        %p467 = pneg %p210
        %p468 = pneg %p207
        %p469 = pneg %p231
        %p470 = pneg %p228
        %p471 = pneg %p252
        %p472 = pneg %p249
        %p473 = pneg %p273
        %p474 = pneg %p270
        %p475 = pneg %p303
        %p476 = pneg %p300
        %p477 = scmp.eq.s32.totalorder %s30, 2
        %s478 = scalar_select %p477, %s31, 0
        %s479 = smul.u32 2, %s478
        %p480 = scmp.lt.s32.totalorder %s479, 1
        %s481 = scalar_select %p480, %s479, 1
        %s482 = smul.addr %s481, 8
        %s483 = scalar_lea.vmem %s11, %s482
        %p484 = scmp.eq.s32.totalorder %s30, 0
        %s485 = scalar_select %p484, %s31, 0
        %s486 = smul.u32 2, %s485
        %p487 = scmp.lt.s32.totalorder %s486, 1
        %s488 = scalar_select %p487, %s486, 1
        %s489 = smul.addr %s488, 4
        %s490 = scalar_lea.vmem %s0, %s489
        %p491 = scmp.eq.s32.totalorder %s30, 0
        %s492 = scalar_select %p491, %s31, 0
        %s493 = smul.u32 2, %s492
        %p494 = scmp.eq.s32.totalorder %s30, 2
        %s495 = scalar_select %p494, %s31, 0
        %s496 = smul.u32 2, %s495
        %p497 = scmp.lt.s32.totalorder %s496, 1
        %s498 = scalar_select %p497, %s496, 1
        %s499 = smul.addr %s498, 8
        %s500 = scalar_lea.vmem %s11, %s499
        %p501 = scmp.eq.s32.totalorder %s30, 2
        %s502 = scalar_select %p501, %s31, 0
        %s503 = smul.u32 2, %s502
        %v505 = vlaneseq
        %v506 = vand.u32 %v505, 127
        %s507 = smul.u32 %s31, 16
        %v508 = vstv %s507
        %v509 = vadd.s32 %v508, %v506
        %vm510 = vcmp.lt.s32.totalorder %v509, 8
        %v511 = vsel %vm510, 1, 0
        %v512 = vcvt.s32.f32 %v511
        %p513 = scmp.eq.s32.totalorder %s30, 0
        // Predicated region
        $region89: #{_lambda_.1} parent=63 // pred_check
          %p514 = pneg %p513
        $region90: #{_lambda_.1} parent=63 // pred_check_branch
          %516 = sbr.rel (%p514) target = $region92
        $region91: #{_lambda_.1} parent=63 // pred_region
          %v517 = vld [vmem:[%s490] sm:$0xf]
          %v518 = vld [vmem:[%s490 + $0x4] sm:$0xf]
          %v519 = vld [vmem:[%s1] sm:$0xf]
          %v520 = vld [vmem:[%s1 + $0x4] sm:$0xf]
          %v521 = vld [vmem:[%s1 + $0x8] sm:$0xf]
          %v522 = vld [vmem:[%s1 + $0xc] sm:$0xf]
          %v523 = vld [vmem:[#allocation8] sm:$0x1]
          %v525 = vlaneseq
          %v526 = vshrl.u32 %v525, 7
          %v527 = vsub.s32 0, %v526
          %v528 = vrot.slane %v523, %v527
          %v532 = vunpack.c.l.b16 %v517
          %v533 = vunpack.c.l.b16 %v518
          %v534 = vpack.c.b16 %v533, %v532
          %v539 = vunpack.c.l.b16 %v519
          %v540 = vunpack.c.l.b16 %v520
          %v541 = vunpack.c.l.b16 %v521
          %v542 = vunpack.c.l.b16 %v522
          %v543 = vpack.c.b16 %v540, %v539
          %v544 = vpack.c.b16 %v542, %v541
          %vm547 = vcmask 261120
          %v549 = vsel %vm547, %v534, 0
          %551 = vmatprep.subr.bf16.mxu0 0
          %552 = vmatpush1.bf16.msra.mxu0 %v543
          %553 = vmatprep.subr.bf16.mxu0 0
          %554 = vmatpush1.bf16.msra.mxu0 %v544
          %555 = vmatprep.subr.bf16.mxu0 0
          %556 = vmatpush1.bf16.msra.mxu0 0
          %557 = vmatprep.subr.bf16.mxu0 0
          %558 = vmatpush1.bf16.msra.mxu0 0
          %559 = vmatprep.subr.bf16.mxu0 0
          %560 = vmatpush1.bf16.msra.mxu0 0
          %561 = vmatprep.subr.bf16.mxu0 0
          %562 = vmatpush1.bf16.msra.mxu0 0
          %563 = vmatprep.subr.bf16.mxu0 0
          %564 = vmatpush1.bf16.msra.mxu0 0
          %565 = vmatprep.subr.bf16.mxu0 0
          %566 = vmatpush1.bf16.msra.mxu0 0
          %567 = vmatprep.subr.bf16.mxu0 0
          %568 = vmatpush1.bf16.msra.mxu0 0
          %569 = vmatprep.subr.bf16.mxu0 0
          %570 = vmatpush1.bf16.msra.mxu0 0
          %571 = vmatprep.subr.bf16.mxu0 0
          %572 = vmatpush1.bf16.msra.mxu0 0
          %573 = vmatprep.subr.bf16.mxu0 0
          %574 = vmatpush1.bf16.msra.mxu0 0
          %575 = vmatprep.subr.bf16.mxu0 0
          %576 = vmatpush1.bf16.msra.mxu0 0
          %577 = vmatprep.subr.bf16.mxu0 0
          %578 = vmatpush1.bf16.msra.mxu0 0
          %579 = vmatprep.subr.bf16.mxu0 0
          %580 = vmatpush1.bf16.msra.mxu0 0
          %581 = vmatprep.subr.bf16.mxu0 0
          %582 = vmatpush1.bf16.msra.mxu0 0
          %583 = vmatprep.mubr.bf16.mxu0 0
          %584 = vmatmul.mubr.bf16.gmra.mrb[0].mxu0 %v549
          %v585 = vpop.f32.mrb[0].mxu0
          %v586 = vadd.f32 %v528, %v585
          %v587 = vpop.f32.mrb[0].mxu0
          %v588 = vpop.f32.mrb[0].mxu0
          %v589 = vadd.f32 %v528, %v588
          %v590 = vpop.f32.mrb[0].mxu0
          %591 = vdwg.mxu0
          %v592 = vmax.f32 %v586, 0.0
          %v593 = vmax.f32 %v589, 0.0
          %v594 = vpack.c.bf16 %v593, %v592
          %s595 = smul.addr %s31, 8
          %s596 = scalar_lea.vmem [#allocation2], %s595
          %597 = vst [vmem:[%s596] sm:$0xff] %v594
          %vm598 = vcmask 130048
          %v600 = vsel %vm598, %v512, 0
          %602 = vmatprep.subr.mxu0 0.0
          %603 = vmatpush1.msra.mxu0 %v592
          %604 = vmatprep.subr.mxu0 0.0
          %605 = vmatpush1.msra.mxu0 %v593
          %606 = vmatprep.subr.mxu0 0.0
          %607 = vmatpush1.msra.mxu0 0.0
          %608 = vmatprep.subr.mxu0 0.0
          %609 = vmatpush1.msra.mxu0 0.0
          %610 = vmatprep.subr.mxu0 0.0
          %611 = vmatpush1.msra.mxu0 0.0
          %612 = vmatprep.subr.mxu0 0.0
          %613 = vmatpush1.msra.mxu0 0.0
          %614 = vmatprep.subr.mxu0 0.0
          %615 = vmatpush1.msra.mxu0 0.0
          %616 = vmatprep.subr.mxu0 0.0
          %617 = vmatpush1.msra.mxu0 0.0
          %618 = vmatprep.subr.mxu0 0.0
          %619 = vmatpush1.msra.mxu0 0.0
          %620 = vmatprep.subr.mxu0 0.0
          %621 = vmatpush1.msra.mxu0 0.0
          %622 = vmatprep.subr.mxu0 0.0
          %623 = vmatpush1.msra.mxu0 0.0
          %624 = vmatprep.subr.mxu0 0.0
          %625 = vmatpush1.msra.mxu0 0.0
          %626 = vmatprep.subr.mxu0 0.0
          %627 = vmatpush1.msra.mxu0 0.0
          %628 = vmatprep.subr.mxu0 0.0
          %629 = vmatpush1.msra.mxu0 0.0
          %630 = vmatprep.subr.mxu0 0.0
          %631 = vmatpush1.msra.mxu0 0.0
          %632 = vmatprep.subr.mxu0 0.0
          %633 = vmatpush1.msra.mxu0 0.0
          %634 = vmatprep.subr.mxu0 0.0
          %635 = vmatpush1.msra.mxu0 0.0
          %636 = vmatprep.subr.mxu0 0.0
          %637 = vmatpush1.msra.mxu0 0.0
          %638 = vmatprep.subr.mxu0 0.0
          %639 = vmatpush1.msra.mxu0 0.0
          %640 = vmatprep.subr.mxu0 0.0
          %641 = vmatpush1.msra.mxu0 0.0
          %642 = vmatprep.subr.mxu0 0.0
          %643 = vmatpush1.msra.mxu0 0.0
          %644 = vmatprep.subr.mxu0 0.0
          %645 = vmatpush1.msra.mxu0 0.0
          %646 = vmatprep.subr.mxu0 0.0
          %647 = vmatpush1.msra.mxu0 0.0
          %648 = vmatprep.subr.mxu0 0.0
          %649 = vmatpush1.msra.mxu0 0.0
          %650 = vmatprep.subr.mxu0 0.0
          %651 = vmatpush1.msra.mxu0 0.0
          %652 = vmatprep.subr.mxu0 0.0
          %653 = vmatpush1.msra.mxu0 0.0
          %654 = vmatprep.subr.mxu0 0.0
          %655 = vmatpush1.msra.mxu0 0.0
          %656 = vmatprep.subr.mxu0 0.0
          %657 = vmatpush1.msra.mxu0 0.0
          %658 = vmatprep.subr.mxu0 0.0
          %659 = vmatpush1.msra.mxu0 0.0
          %660 = vmatprep.subr.mxu0 0.0
          %661 = vmatpush1.msra.mxu0 0.0
          %662 = vmatprep.subr.mxu0 0.0
          %663 = vmatpush1.msra.mxu0 0.0
          %664 = vmatprep.subr.mxu0 0.0
          %665 = vmatpush1.msra.mxu0 0.0
          %666 = vmatprep.mubr.f32.mxu0 0.0
          %667 = vmatmul.mubr.f32.gmra.mrb[0].mxu0 %v600
          %v668 = vpop.f32.mrb[0].mxu0
          %v669 = vadd.f32 0.0, %v668
          %v670 = vpop.f32.mrb[0].mxu0
          %671 = vdwg.mxu0
          %v672 = vmul.f32 %v592, %v592
          %v673 = vmul.f32 %v593, %v593
          %674 = vmatprep.subr.mxu0 0.0
          %675 = vmatpush1.msra.mxu0 %v672
          %676 = vmatprep.subr.mxu0 0.0
          %677 = vmatpush1.msra.mxu0 %v673
          %678 = vmatprep.subr.mxu0 0.0
          %679 = vmatpush1.msra.mxu0 0.0
          %680 = vmatprep.subr.mxu0 0.0
          %681 = vmatpush1.msra.mxu0 0.0
          %682 = vmatprep.subr.mxu0 0.0
          %683 = vmatpush1.msra.mxu0 0.0
          %684 = vmatprep.subr.mxu0 0.0
          %685 = vmatpush1.msra.mxu0 0.0
          %686 = vmatprep.subr.mxu0 0.0
          %687 = vmatpush1.msra.mxu0 0.0
          %688 = vmatprep.subr.mxu0 0.0
          %689 = vmatpush1.msra.mxu0 0.0
          %690 = vmatprep.subr.mxu0 0.0
          %691 = vmatpush1.msra.mxu0 0.0
          %692 = vmatprep.subr.mxu0 0.0
          %693 = vmatpush1.msra.mxu0 0.0
          %694 = vmatprep.subr.mxu0 0.0
          %695 = vmatpush1.msra.mxu0 0.0
          %696 = vmatprep.subr.mxu0 0.0
          %697 = vmatpush1.msra.mxu0 0.0
          %698 = vmatprep.subr.mxu0 0.0
          %699 = vmatpush1.msra.mxu0 0.0
          %700 = vmatprep.subr.mxu0 0.0
          %701 = vmatpush1.msra.mxu0 0.0
          %702 = vmatprep.subr.mxu0 0.0
          %703 = vmatpush1.msra.mxu0 0.0
          %704 = vmatprep.subr.mxu0 0.0
          %705 = vmatpush1.msra.mxu0 0.0
          %706 = vmatprep.subr.mxu0 0.0
          %707 = vmatpush1.msra.mxu0 0.0
          %708 = vmatprep.subr.mxu0 0.0
          %709 = vmatpush1.msra.mxu0 0.0
          %710 = vmatprep.subr.mxu0 0.0
          %711 = vmatpush1.msra.mxu0 0.0
          %712 = vmatprep.subr.mxu0 0.0
          %713 = vmatpush1.msra.mxu0 0.0
          %714 = vmatprep.subr.mxu0 0.0
          %715 = vmatpush1.msra.mxu0 0.0
          %716 = vmatprep.subr.mxu0 0.0
          %717 = vmatpush1.msra.mxu0 0.0
          %718 = vmatprep.subr.mxu0 0.0
          %719 = vmatpush1.msra.mxu0 0.0
          %720 = vmatprep.subr.mxu0 0.0
          %721 = vmatpush1.msra.mxu0 0.0
          %722 = vmatprep.subr.mxu0 0.0
          %723 = vmatpush1.msra.mxu0 0.0
          %724 = vmatprep.subr.mxu0 0.0
          %725 = vmatpush1.msra.mxu0 0.0
          %726 = vmatprep.subr.mxu0 0.0
          %727 = vmatpush1.msra.mxu0 0.0
          %728 = vmatprep.subr.mxu0 0.0
          %729 = vmatpush1.msra.mxu0 0.0
          %730 = vmatprep.subr.mxu0 0.0
          %731 = vmatpush1.msra.mxu0 0.0
          %732 = vmatprep.subr.mxu0 0.0
          %733 = vmatpush1.msra.mxu0 0.0
          %734 = vmatprep.subr.mxu0 0.0
          %735 = vmatpush1.msra.mxu0 0.0
          %736 = vmatprep.subr.mxu0 0.0
          %737 = vmatpush1.msra.mxu0 0.0
          %738 = vmatprep.mubr.f32.mxu0 0.0
          %739 = vmatmul.mubr.f32.gmra.mrb[0].mxu0 %v600
          %v740 = vpop.f32.mrb[0].mxu0
          %v741 = vadd.f32 0.0, %v740
          %v742 = vpop.f32.mrb[0].mxu0
          %743 = vdwg.mxu0
          %v745 = vrot.slane %v741, 7
          %vm747 = vcmask 1040384
          %v748 = vsel %vm747, %v669, %v745
          %p749 = scmp.eq.s32.totalorder %s31, 0
          // Predicated region
          $region93: #{_lambda_.1} parent=91 // pred_check
            %p750 = pneg %p749
          $region94: #{_lambda_.1} parent=91 // pred_check_branch
            %752 = sbr.rel (%p750) target = $region96
          $region95: #{_lambda_.1} parent=91 // pred_region
            %753 = vst [vmem:[#allocation4] sm:$0x3] 0.0
          $region96: #{_lambda_.1} parent=91 // pred_fallthru
            _
          %v754 = vld [vmem:[#allocation4] sm:$0x3]
          %v755 = vadd.f32 %v754, %v748
          %756 = vst [vmem:[#allocation4] sm:$0x3] %v755
        $region92: #{_lambda_.1} parent=63 // pred_fallthru
          _
        %p757 = scmp.eq.s32.totalorder %s30, 1
        // Predicated region
        $region97: #{_lambda_.1} parent=63 // pred_check
          %p758 = pneg %p757
        $region98: #{_lambda_.1} parent=63 // pred_check_branch
          %760 = sbr.rel (%p758) target = $region100
        $region99: #{_lambda_.1} parent=63 // pred_region
          %p761 = scmp.eq.s32.totalorder %s31, 0
          // Predicated region
          $region101: #{_lambda_.1} parent=99 // pred_check
            %p762 = pneg %p761
          $region102: #{_lambda_.1} parent=99 // pred_check_branch
            %764 = sbr.rel (%p762) target = $region104
          $region103: #{_lambda_.1} parent=99 // pred_region
            %v765 = vld [vmem:[#allocation4] sm:$0x1]
            %v766 = vmul.f32 %v765, 0.125
            %v767 = vld [vmem:[#allocation4 + $0x1] sm:$0x1]
            %v768 = vmul.f32 %v767, 0.125
            %v769 = vmul.f32 %v766, %v766
            %v770 = vsub.f32 %v768, %v769
            %v771 = vmax.f32 %v770, 0.0
            %v772 = vadd.f32 %v771, 1e-05
            %v773 = vrsqrt.pop %v772
            %v774 = vld [vmem:[#allocation10] sm:$0x1]
            %v775 = vmul.f32 %v773, %v774
            %776 = vst [vmem:[#allocation6] sm:$0x1] %v775
            %v777 = vld [vmem:[#allocation12] sm:$0x1]
            %v778 = vmul.f32 %v766, %v775
            %v779 = vsub.f32 %v777, %v778
            %780 = vst [vmem:[#allocation6 + $0x1] sm:$0x1] %v779
          $region104: #{_lambda_.1} parent=99 // pred_fallthru
            _
          %s781 = smul.addr %s31, 8
          %s782 = scalar_lea.vmem [#allocation2], %s781
          %v783 = vld [vmem:[%s782] sm:$0xff]
          %v784 = vunpack.c.l.bf16 %v783
          %v785 = vunpack.c.h.bf16 %v783
          %v786 = vld [vmem:[#allocation6] sm:$0x1]
          %v787 = vlaneseq
          %v788 = vshrl.u32 %v787, 7
          %v789 = vsub.s32 0, %v788
          %v790 = vrot.slane %v786, %v789
          %v791 = vmul.f32 %v784, %v790
          %v792 = vmul.f32 %v785, %v790
          %v793 = vld [vmem:[#allocation6 + $0x1] sm:$0x1]
          %v794 = vlaneseq
          %v795 = vshrl.u32 %v794, 7
          %v796 = vsub.s32 0, %v795
          %v797 = vrot.slane %v793, %v796
          %v798 = vadd.f32 %v791, %v797
          %v799 = vadd.f32 %v792, %v797
          %v800 = vpack.c.bf16 %v799, %v798
          %v801 = vld [vmem:[#allocation13] sm:$0xf]
          %v802 = vld [vmem:[#allocation13 + $0x4] sm:$0xf]
          %v803 = vld [vmem:[#allocation13 + $0x8] sm:$0xf]
          %v804 = vld [vmem:[#allocation13 + $0xc] sm:$0xf]
          %v805 = vld [vmem:[#allocation13 + $0x10] sm:$0xf]
          %v806 = vld [vmem:[#allocation13 + $0x14] sm:$0xf]
          %v807 = vld [vmem:[#allocation13 + $0x18] sm:$0xf]
          %v808 = vld [vmem:[#allocation13 + $0x1c] sm:$0xf]
          %v809 = vld [vmem:[#allocation13 + $0x20] sm:$0xf]
          %v810 = vld [vmem:[#allocation13 + $0x24] sm:$0xf]
          %v811 = vld [vmem:[#allocation13 + $0x28] sm:$0xf]
          %v812 = vld [vmem:[#allocation13 + $0x2c] sm:$0xf]
          %v813 = vld [vmem:[#allocation13 + $0x30] sm:$0xf]
          %v814 = vld [vmem:[#allocation13 + $0x34] sm:$0xf]
          %v815 = vld [vmem:[#allocation13 + $0x38] sm:$0xf]
          %v816 = vld [vmem:[#allocation13 + $0x3c] sm:$0xf]
          %v817 = vld [vmem:[#allocation15] sm:$0x1]
          %v819 = vlaneseq
          %v820 = vshrl.u32 %v819, 7
          %v821 = vsub.s32 0, %v820
          %v822 = vrot.slane %v817, %v821
          %v840 = vunpack.c.l.b16 %v801
          %v841 = vunpack.c.l.b16 %v802
          %v842 = vunpack.c.l.b16 %v803
          %v843 = vunpack.c.l.b16 %v804
          %v844 = vunpack.c.l.b16 %v805
          %v845 = vunpack.c.l.b16 %v806
          %v846 = vunpack.c.l.b16 %v807
          %v847 = vunpack.c.l.b16 %v808
          %v848 = vunpack.c.l.b16 %v809
          %v849 = vunpack.c.l.b16 %v810
          %v850 = vunpack.c.l.b16 %v811
          %v851 = vunpack.c.l.b16 %v812
          %v852 = vunpack.c.l.b16 %v813
          %v853 = vunpack.c.l.b16 %v814
          %v854 = vunpack.c.l.b16 %v815
          %v855 = vunpack.c.l.b16 %v816
          %v856 = vpack.c.b16 %v841, %v840
          %v857 = vpack.c.b16 %v843, %v842
          %v858 = vpack.c.b16 %v845, %v844
          %v859 = vpack.c.b16 %v847, %v846
          %v860 = vpack.c.b16 %v849, %v848
          %v861 = vpack.c.b16 %v851, %v850
          %v862 = vpack.c.b16 %v853, %v852
          %v863 = vpack.c.b16 %v855, %v854
          %872 = vmatprep.subr.bf16.mxu0 0
          %873 = vmatpush1.bf16.msra.mxu0 %v856
          %874 = vmatprep.subr.bf16.mxu0 0
          %875 = vmatpush1.bf16.msra.mxu0 %v857
          %876 = vmatprep.subr.bf16.mxu0 0
          %877 = vmatpush1.bf16.msra.mxu0 %v858
          %878 = vmatprep.subr.bf16.mxu0 0
          %879 = vmatpush1.bf16.msra.mxu0 %v859
          %880 = vmatprep.subr.bf16.mxu0 0
          %881 = vmatpush1.bf16.msra.mxu0 %v860
          %882 = vmatprep.subr.bf16.mxu0 0
          %883 = vmatpush1.bf16.msra.mxu0 %v861
          %884 = vmatprep.subr.bf16.mxu0 0
          %885 = vmatpush1.bf16.msra.mxu0 %v862
          %886 = vmatprep.subr.bf16.mxu0 0
          %887 = vmatpush1.bf16.msra.mxu0 %v863
          %888 = vmatprep.subr.bf16.mxu0 0
          %889 = vmatpush1.bf16.msra.mxu0 0
          %890 = vmatprep.subr.bf16.mxu0 0
          %891 = vmatpush1.bf16.msra.mxu0 0
          %892 = vmatprep.subr.bf16.mxu0 0
          %893 = vmatpush1.bf16.msra.mxu0 0
          %894 = vmatprep.subr.bf16.mxu0 0
          %895 = vmatpush1.bf16.msra.mxu0 0
          %896 = vmatprep.subr.bf16.mxu0 0
          %897 = vmatpush1.bf16.msra.mxu0 0
          %898 = vmatprep.subr.bf16.mxu0 0
          %899 = vmatpush1.bf16.msra.mxu0 0
          %900 = vmatprep.subr.bf16.mxu0 0
          %901 = vmatpush1.bf16.msra.mxu0 0
          %902 = vmatprep.subr.bf16.mxu0 0
          %903 = vmatpush1.bf16.msra.mxu0 0
          %904 = vmatprep.mubr.bf16.mxu0 0
          %905 = vmatmul.mubr.bf16.gmra.mrb[0].mxu0 %v800
          %v906 = vpop.f32.mrb[0].mxu0
          %v907 = vadd.f32 %v822, %v906
          %v908 = vpop.f32.mrb[0].mxu0
          %v909 = vpop.f32.mrb[0].mxu0
          %v910 = vadd.f32 %v822, %v909
          %v911 = vpop.f32.mrb[0].mxu0
          %912 = vdwg.mxu0
          %v913 = vmax.f32 %v907, 0.0
          %v914 = vmax.f32 %v910, 0.0
          %v915 = vpack.c.bf16 %v914, %v913
          %s916 = smul.addr %s31, 8
          %s917 = scalar_lea.vmem [#allocation3], %s916
          %918 = vst [vmem:[%s917] sm:$0xff] %v915
          %vm919 = vcmask 130048
          %v921 = vsel %vm919, %v512, 0
          %923 = vmatprep.subr.mxu0 0.0
          %924 = vmatpush1.msra.mxu0 %v913
          %925 = vmatprep.subr.mxu0 0.0
          %926 = vmatpush1.msra.mxu0 %v914
          %927 = vmatprep.subr.mxu0 0.0
          %928 = vmatpush1.msra.mxu0 0.0
          %929 = vmatprep.subr.mxu0 0.0
          %930 = vmatpush1.msra.mxu0 0.0
          %931 = vmatprep.subr.mxu0 0.0
          %932 = vmatpush1.msra.mxu0 0.0
          %933 = vmatprep.subr.mxu0 0.0
          %934 = vmatpush1.msra.mxu0 0.0
          %935 = vmatprep.subr.mxu0 0.0
          %936 = vmatpush1.msra.mxu0 0.0
          %937 = vmatprep.subr.mxu0 0.0
          %938 = vmatpush1.msra.mxu0 0.0
          %939 = vmatprep.subr.mxu0 0.0
          %940 = vmatpush1.msra.mxu0 0.0
          %941 = vmatprep.subr.mxu0 0.0
          %942 = vmatpush1.msra.mxu0 0.0
          %943 = vmatprep.subr.mxu0 0.0
          %944 = vmatpush1.msra.mxu0 0.0
          %945 = vmatprep.subr.mxu0 0.0
          %946 = vmatpush1.msra.mxu0 0.0
          %947 = vmatprep.subr.mxu0 0.0
          %948 = vmatpush1.msra.mxu0 0.0
          %949 = vmatprep.subr.mxu0 0.0
          %950 = vmatpush1.msra.mxu0 0.0
          %951 = vmatprep.subr.mxu0 0.0
          %952 = vmatpush1.msra.mxu0 0.0
          %953 = vmatprep.subr.mxu0 0.0
          %954 = vmatpush1.msra.mxu0 0.0
          %955 = vmatprep.subr.mxu0 0.0
          %956 = vmatpush1.msra.mxu0 0.0
          %957 = vmatprep.subr.mxu0 0.0
          %958 = vmatpush1.msra.mxu0 0.0
          %959 = vmatprep.subr.mxu0 0.0
          %960 = vmatpush1.msra.mxu0 0.0
          %961 = vmatprep.subr.mxu0 0.0
          %962 = vmatpush1.msra.mxu0 0.0
          %963 = vmatprep.subr.mxu0 0.0
          %964 = vmatpush1.msra.mxu0 0.0
          %965 = vmatprep.subr.mxu0 0.0
          %966 = vmatpush1.msra.mxu0 0.0
          %967 = vmatprep.subr.mxu0 0.0
          %968 = vmatpush1.msra.mxu0 0.0
          %969 = vmatprep.subr.mxu0 0.0
          %970 = vmatpush1.msra.mxu0 0.0
          %971 = vmatprep.subr.mxu0 0.0
          %972 = vmatpush1.msra.mxu0 0.0
          %973 = vmatprep.subr.mxu0 0.0
          %974 = vmatpush1.msra.mxu0 0.0
          %975 = vmatprep.subr.mxu0 0.0
          %976 = vmatpush1.msra.mxu0 0.0
          %977 = vmatprep.subr.mxu0 0.0
          %978 = vmatpush1.msra.mxu0 0.0
          %979 = vmatprep.subr.mxu0 0.0
          %980 = vmatpush1.msra.mxu0 0.0
          %981 = vmatprep.subr.mxu0 0.0
          %982 = vmatpush1.msra.mxu0 0.0
          %983 = vmatprep.subr.mxu0 0.0
          %984 = vmatpush1.msra.mxu0 0.0
          %985 = vmatprep.subr.mxu0 0.0
          %986 = vmatpush1.msra.mxu0 0.0
          %987 = vmatprep.mubr.f32.mxu0 0.0
          %988 = vmatmul.mubr.f32.gmra.mrb[0].mxu0 %v921
          %v989 = vpop.f32.mrb[0].mxu0
          %v990 = vadd.f32 0.0, %v989
          %v991 = vpop.f32.mrb[0].mxu0
          %992 = vdwg.mxu0
          %v993 = vmul.f32 %v913, %v913
          %v994 = vmul.f32 %v914, %v914
          %995 = vmatprep.subr.mxu0 0.0
          %996 = vmatpush1.msra.mxu0 %v993
          %997 = vmatprep.subr.mxu0 0.0
          %998 = vmatpush1.msra.mxu0 %v994
          %999 = vmatprep.subr.mxu0 0.0
          %1000 = vmatpush1.msra.mxu0 0.0
          %1001 = vmatprep.subr.mxu0 0.0
          %1002 = vmatpush1.msra.mxu0 0.0
          %1003 = vmatprep.subr.mxu0 0.0
          %1004 = vmatpush1.msra.mxu0 0.0
          %1005 = vmatprep.subr.mxu0 0.0
          %1006 = vmatpush1.msra.mxu0 0.0
          %1007 = vmatprep.subr.mxu0 0.0
          %1008 = vmatpush1.msra.mxu0 0.0
          %1009 = vmatprep.subr.mxu0 0.0
          %1010 = vmatpush1.msra.mxu0 0.0
          %1011 = vmatprep.subr.mxu0 0.0
          %1012 = vmatpush1.msra.mxu0 0.0
          %1013 = vmatprep.subr.mxu0 0.0
          %1014 = vmatpush1.msra.mxu0 0.0
          %1015 = vmatprep.subr.mxu0 0.0
          %1016 = vmatpush1.msra.mxu0 0.0
          %1017 = vmatprep.subr.mxu0 0.0
          %1018 = vmatpush1.msra.mxu0 0.0
          %1019 = vmatprep.subr.mxu0 0.0
          %1020 = vmatpush1.msra.mxu0 0.0
          %1021 = vmatprep.subr.mxu0 0.0
          %1022 = vmatpush1.msra.mxu0 0.0
          %1023 = vmatprep.subr.mxu0 0.0
          %1024 = vmatpush1.msra.mxu0 0.0
          %1025 = vmatprep.subr.mxu0 0.0
          %1026 = vmatpush1.msra.mxu0 0.0
          %1027 = vmatprep.subr.mxu0 0.0
          %1028 = vmatpush1.msra.mxu0 0.0
          %1029 = vmatprep.subr.mxu0 0.0
          %1030 = vmatpush1.msra.mxu0 0.0
          %1031 = vmatprep.subr.mxu0 0.0
          %1032 = vmatpush1.msra.mxu0 0.0
          %1033 = vmatprep.subr.mxu0 0.0
          %1034 = vmatpush1.msra.mxu0 0.0
          %1035 = vmatprep.subr.mxu0 0.0
          %1036 = vmatpush1.msra.mxu0 0.0
          %1037 = vmatprep.subr.mxu0 0.0
          %1038 = vmatpush1.msra.mxu0 0.0
          %1039 = vmatprep.subr.mxu0 0.0
          %1040 = vmatpush1.msra.mxu0 0.0
          %1041 = vmatprep.subr.mxu0 0.0
          %1042 = vmatpush1.msra.mxu0 0.0
          %1043 = vmatprep.subr.mxu0 0.0
          %1044 = vmatpush1.msra.mxu0 0.0
          %1045 = vmatprep.subr.mxu0 0.0
          %1046 = vmatpush1.msra.mxu0 0.0
          %1047 = vmatprep.subr.mxu0 0.0
          %1048 = vmatpush1.msra.mxu0 0.0
          %1049 = vmatprep.subr.mxu0 0.0
          %1050 = vmatpush1.msra.mxu0 0.0
          %1051 = vmatprep.subr.mxu0 0.0
          %1052 = vmatpush1.msra.mxu0 0.0
          %1053 = vmatprep.subr.mxu0 0.0
          %1054 = vmatpush1.msra.mxu0 0.0
          %1055 = vmatprep.subr.mxu0 0.0
          %1056 = vmatpush1.msra.mxu0 0.0
          %1057 = vmatprep.subr.mxu0 0.0
          %1058 = vmatpush1.msra.mxu0 0.0
          %1059 = vmatprep.mubr.f32.mxu0 0.0
          %1060 = vmatmul.mubr.f32.gmra.mrb[0].mxu0 %v921
          %v1061 = vpop.f32.mrb[0].mxu0
          %v1062 = vadd.f32 0.0, %v1061
          %v1063 = vpop.f32.mrb[0].mxu0
          %1064 = vdwg.mxu0
          %v1066 = vrot.slane %v1062, 7
          %vm1068 = vcmask 1040384
          %v1069 = vsel %vm1068, %v990, %v1066
          // Predicated region
          $region105: #{_lambda_.1} parent=99 // pred_check
            %p1070 = pneg %p761
          $region106: #{_lambda_.1} parent=99 // pred_check_branch
            %1072 = sbr.rel (%p1070) target = $region108
          $region107: #{_lambda_.1} parent=99 // pred_region
            %1073 = vst [vmem:[#allocation5] sm:$0x3] 0.0
          $region108: #{_lambda_.1} parent=99 // pred_fallthru
            _
          %v1074 = vld [vmem:[#allocation5] sm:$0x3]
          %v1075 = vadd.f32 %v1074, %v1069
          %1076 = vst [vmem:[#allocation5] sm:$0x3] %v1075
        $region100: #{_lambda_.1} parent=63 // pred_fallthru
          _
        %p1077 = scmp.eq.s32.totalorder %s30, 2
        // Predicated region
        $region109: #{_lambda_.1} parent=63 // pred_check
          %p1078 = pneg %p1077
        $region110: #{_lambda_.1} parent=63 // pred_check_branch
          %1080 = sbr.rel (%p1078) target = $region112
        $region111: #{_lambda_.1} parent=63 // pred_region
          %p1081 = scmp.eq.s32.totalorder %s31, 0
          // Predicated region
          $region113: #{_lambda_.1} parent=111 // pred_check
            %p1082 = pneg %p1081
          $region114: #{_lambda_.1} parent=111 // pred_check_branch
            %1084 = sbr.rel (%p1082) target = $region116
          $region115: #{_lambda_.1} parent=111 // pred_region
            %v1085 = vld [vmem:[#allocation5] sm:$0x1]
            %v1086 = vmul.f32 %v1085, 0.125
            %v1087 = vld [vmem:[#allocation5 + $0x1] sm:$0x1]
            %v1088 = vmul.f32 %v1087, 0.125
            %v1089 = vmul.f32 %v1086, %v1086
            %v1090 = vsub.f32 %v1088, %v1089
            %v1091 = vmax.f32 %v1090, 0.0
            %v1092 = vadd.f32 %v1091, 1e-05
            %v1093 = vrsqrt.pop %v1092
            %v1094 = vld [vmem:[#allocation16] sm:$0x1]
            %v1095 = vmul.f32 %v1093, %v1094
            %1096 = vst [vmem:[#allocation7] sm:$0x1] %v1095
            %v1097 = vld [vmem:[%s8] sm:$0x1]
            %v1098 = vmul.f32 %v1086, %v1095
            %v1099 = vsub.f32 %v1097, %v1098
            %1100 = vst [vmem:[#allocation7 + $0x1] sm:$0x1] %v1099
          $region116: #{_lambda_.1} parent=111 // pred_fallthru
            _
          %s1101 = smul.addr %s31, 8
          %s1102 = scalar_lea.vmem [#allocation3], %s1101
          %v1103 = vld [vmem:[%s1102] sm:$0xff]
          %v1104 = vunpack.c.l.bf16 %v1103
          %v1105 = vunpack.c.h.bf16 %v1103
          %v1106 = vld [vmem:[#allocation7] sm:$0x1]
          %v1107 = vlaneseq
          %v1108 = vshrl.u32 %v1107, 7
          %v1109 = vsub.s32 0, %v1108
          %v1110 = vrot.slane %v1106, %v1109
          %v1111 = vmul.f32 %v1104, %v1110
          %v1112 = vmul.f32 %v1105, %v1110
          %v1113 = vld [vmem:[#allocation7 + $0x1] sm:$0x1]
          %v1114 = vlaneseq
          %v1115 = vshrl.u32 %v1114, 7
          %v1116 = vsub.s32 0, %v1115
          %v1117 = vrot.slane %v1113, %v1116
          %v1118 = vadd.f32 %v1111, %v1117
          %v1119 = vadd.f32 %v1112, %v1117
          %v1120 = vpack.c.bf16 %v1119, %v1118
          %v1121 = vld [vmem:[%s9] sm:$0xf]
          %v1122 = vld [vmem:[%s9 + $0x4] sm:$0xf]
          %v1123 = vld [vmem:[%s9 + $0x8] sm:$0xf]
          %v1124 = vld [vmem:[%s9 + $0xc] sm:$0xf]
          %v1125 = vld [vmem:[%s9 + $0x10] sm:$0xf]
          %v1126 = vld [vmem:[%s9 + $0x14] sm:$0xf]
          %v1127 = vld [vmem:[%s9 + $0x18] sm:$0xf]
          %v1128 = vld [vmem:[%s9 + $0x1c] sm:$0xf]
          %v1129 = vld [vmem:[%s9 + $0x20] sm:$0xf]
          %v1130 = vld [vmem:[%s9 + $0x24] sm:$0xf]
          %v1131 = vld [vmem:[%s9 + $0x28] sm:$0xf]
          %v1132 = vld [vmem:[%s9 + $0x2c] sm:$0xf]
          %v1133 = vld [vmem:[%s9 + $0x30] sm:$0xf]
          %v1134 = vld [vmem:[%s9 + $0x34] sm:$0xf]
          %v1135 = vld [vmem:[%s9 + $0x38] sm:$0xf]
          %v1136 = vld [vmem:[%s9 + $0x3c] sm:$0xf]
          %v1137 = vld [vmem:[%s10] sm:$0x1]
          %v1139 = vlaneseq
          %v1140 = vshrl.u32 %v1139, 7
          %v1141 = vsub.s32 0, %v1140
          %v1142 = vrot.slane %v1137, %v1141
          %v1160 = vunpack.c.l.b16 %v1121
          %v1161 = vunpack.c.l.b16 %v1122
          %v1162 = vunpack.c.l.b16 %v1123
          %v1163 = vunpack.c.l.b16 %v1124
          %v1164 = vunpack.c.l.b16 %v1125
          %v1165 = vunpack.c.l.b16 %v1126
          %v1166 = vunpack.c.l.b16 %v1127
          %v1167 = vunpack.c.l.b16 %v1128
          %v1168 = vunpack.c.l.b16 %v1129
          %v1169 = vunpack.c.l.b16 %v1130
          %v1170 = vunpack.c.l.b16 %v1131
          %v1171 = vunpack.c.l.b16 %v1132
          %v1172 = vunpack.c.l.b16 %v1133
          %v1173 = vunpack.c.l.b16 %v1134
          %v1174 = vunpack.c.l.b16 %v1135
          %v1175 = vunpack.c.l.b16 %v1136
          %v1176 = vpack.c.b16 %v1161, %v1160
          %v1177 = vpack.c.b16 %v1163, %v1162
          %v1178 = vpack.c.b16 %v1165, %v1164
          %v1179 = vpack.c.b16 %v1167, %v1166
          %v1180 = vpack.c.b16 %v1169, %v1168
          %v1181 = vpack.c.b16 %v1171, %v1170
          %v1182 = vpack.c.b16 %v1173, %v1172
          %v1183 = vpack.c.b16 %v1175, %v1174
          %1192 = vmatprep.subr.bf16.mxu0 0
          %1193 = vmatpush1.bf16.msra.mxu0 %v1176
          %1194 = vmatprep.subr.bf16.mxu0 0
          %1195 = vmatpush1.bf16.msra.mxu0 %v1177
          %1196 = vmatprep.subr.bf16.mxu0 0
          %1197 = vmatpush1.bf16.msra.mxu0 %v1178
          %1198 = vmatprep.subr.bf16.mxu0 0
          %1199 = vmatpush1.bf16.msra.mxu0 %v1179
          %1200 = vmatprep.subr.bf16.mxu0 0
          %1201 = vmatpush1.bf16.msra.mxu0 %v1180
          %1202 = vmatprep.subr.bf16.mxu0 0
          %1203 = vmatpush1.bf16.msra.mxu0 %v1181
          %1204 = vmatprep.subr.bf16.mxu0 0
          %1205 = vmatpush1.bf16.msra.mxu0 %v1182
          %1206 = vmatprep.subr.bf16.mxu0 0
          %1207 = vmatpush1.bf16.msra.mxu0 %v1183
          %1208 = vmatprep.subr.bf16.mxu0 0
          %1209 = vmatpush1.bf16.msra.mxu0 0
          %1210 = vmatprep.subr.bf16.mxu0 0
          %1211 = vmatpush1.bf16.msra.mxu0 0
          %1212 = vmatprep.subr.bf16.mxu0 0
          %1213 = vmatpush1.bf16.msra.mxu0 0
          %1214 = vmatprep.subr.bf16.mxu0 0
          %1215 = vmatpush1.bf16.msra.mxu0 0
          %1216 = vmatprep.subr.bf16.mxu0 0
          %1217 = vmatpush1.bf16.msra.mxu0 0
          %1218 = vmatprep.subr.bf16.mxu0 0
          %1219 = vmatpush1.bf16.msra.mxu0 0
          %1220 = vmatprep.subr.bf16.mxu0 0
          %1221 = vmatpush1.bf16.msra.mxu0 0
          %1222 = vmatprep.subr.bf16.mxu0 0
          %1223 = vmatpush1.bf16.msra.mxu0 0
          %1224 = vmatprep.mubr.bf16.mxu0 0
          %1225 = vmatmul.mubr.bf16.gmra.mrb[0].mxu0 %v1120
          %v1226 = vpop.f32.mrb[0].mxu0
          %v1227 = vadd.f32 %v1142, %v1226
          %v1228 = vpop.f32.mrb[0].mxu0
          %v1229 = vpop.f32.mrb[0].mxu0
          %v1230 = vadd.f32 %v1142, %v1229
          %v1231 = vpop.f32.mrb[0].mxu0
          %1232 = vdwg.mxu0
          %vm1233 = vcmask 130048
          %1234 = vst.msk [vmem:[%s500] sm:$0xff] %vm1233, %v1227
          %1235 = vst.msk [vmem:[%s500 + $0x8] sm:$0xff] %vm1233, %v1230
          %1238 = vrot.lane.b32.xlu0 %v1227, 112
          %v1239 = vpop.permute.xlu0 %1238
          %1240 = vrot.lane.b32.xlu0 %v1230, 112
          %v1241 = vpop.permute.xlu0 %1240
          %s1244 = scalar_lea.vmem %s500, 16
          %1245 = vst.msk [vmem:[%s1244] sm:$0xff] %vm1233, %v1239
          %1246 = vst.msk [vmem:[%s1244 + $0x8] sm:$0xff] %vm1233, %v1241
        $region112: #{_lambda_.1} parent=63 // pred_fallthru
          _
        %p1247 = scmp.eq.s32.totalorder %s30, 2
        %s1248 = scalar_select %p1247, %s31, 0
        %s1249 = smul.u32 2, %s1248
        %p1250 = scmp.lt.s32.totalorder %s1249, 1
        %s1251 = scalar_select %p1250, %s1249, 1
        %s1252 = smul.addr %s1251, 8
        %s1253 = scalar_lea.vmem %s11, %s1252
        // Predicated region
        $region117: #{_lambda_.1} parent=63 // pred_check
          %p1254 = pneg %p300
        $region118: #{_lambda_.1} parent=63 // pred_check_branch
          %1256 = sbr.rel (%p1254) target = $region120
        $region119: #{_lambda_.1} parent=63 // pred_region
          %p1257 = scmp.eq.s32.totalorder %s30, 2
          %s1258 = scalar_select %p1257, %s31, 0
          %s1259 = smul.u32 2, %s1258
        $region120: #{_lambda_.1} parent=63 // pred_fallthru
          _
      $region64: #{_lambda_.1} parent=5 // pred_fallthru
        _
      %p1260 = scmp.le.s32.totalorder 2, %s21
      // Predicated region
      $region121: #{_lambda_.1} parent=5 // pred_check
        %p1261 = pneg %p1260
      $region122: #{_lambda_.1} parent=5 // pred_check_branch
        %1263 = sbr.rel (%p1261) target = $region124
      $region123: #{_lambda_.1} parent=5 // pred_region
        %s1264 = ssub.s32 %s21, 2
        // Predicated region
        $region125: #{_lambda_.1} parent=123 // pred_check
          %p1265 = pneg %p306
        $region126: #{_lambda_.1} parent=123 // pred_check_branch
          %1267 = sbr.rel (%p1265) target = $region128
        $region127: #{_lambda_.1} parent=123 // pred_region
          %p1268 = scmp.eq.s32.totalorder %s32, 2
          %s1269 = scalar_select %p1268, %s33, 0
          %s1270 = smul.u32 2, %s1269
          %p1271 = scmp.lt.s32.totalorder %s1270, 1
          %s1272 = scalar_select %p1271, %s1270, 1
          %s1273 = smul.addr %s1272, 8
          %s1274 = scalar_lea.vmem %s11, %s1273
        $region128: #{_lambda_.1} parent=123 // pred_fallthru
          _
      $region124: #{_lambda_.1} parent=5 // pred_fallthru
        _
    $region6: #{_lambda_.1} parent=1 // loop_footer
      %s25 = sadd.s32 1, %s21
    $region7: #{_lambda_.1} parent=1 // loop_footer_branch
      %20 = sbr.rel target = $region3
    $region8: #{_lambda_.1} parent=1 // loop_exit
      _
    %1275 = vsyncpa [#allocation9], 1
    %s1276 = scalar_lea.sflag [#allocation9], 1
    %1277 = vsyncpa %s1276, 1
    %1278 = vsyncpa [#allocation11], 1
    %1279 = vsyncpa [#allocation14], 1
    %1280 = vsyncpa [#allocation17], 1

</llo_original>
